<compile_context>
chip_gen: v7x
topology: tpu7x:2x2x1
jax: 0.10.0
libtpu: 0.0.40
codegen_flags: <defaults>
</compile_context>

<pallas_src>
import functools
import math

import jax
import jax.numpy as jnp
from jax import lax
from jax.experimental import pallas as pl
from jax.experimental.pallas import tpu as pltpu

HEADS = 4                      # heads_count
MATMUL_DTYPE = jnp.bfloat16    # MXU operand dtype; set to jnp.float32 for exact-f32 path


def mha_kernel(q_ref, k_ref, v_ref,
               wq_ref, bq_ref, wk_ref, wv_ref, bv_ref,
               wo_ref, bo_ref, o_ref, *, seq_len, heads):
    """One grid step: full MHA for a block of `rows // seq_len` batch elements.

    q/k/v refs : (rows, D) activations (batch flattened into rows, rows = Bb*S).
    wq ref     : (D, D) query weights, pre-scaled by 1/sqrt(dh), stored in MATMUL_DTYPE.
    bq ref     : (1, D) f32 query bias, pre-scaled by 1/sqrt(dh).
    wk ref     : (D, D) key weights (bias dropped: cancels under softmax).
    wv/bv refs : (D, D) value weights / (1, D) f32 bias.
    wo/bo refs : (D, D) final-projection weights / (1, D) f32 bias.
    """
    rows, D = q_ref.shape
    S = seq_len
    Bb = rows // S
    H = heads
    dh = D // H
    mm = MATMUL_DTYPE

    # --- Full-width projections: 3 matmuls total (scale folded, bk dropped). ---
    q_all = jnp.dot(q_ref[...].astype(mm), wq_ref[...],
                    preferred_element_type=jnp.float32) + bq_ref[...]
    k_all = jnp.dot(k_ref[...].astype(mm), wk_ref[...],
                    preferred_element_type=jnp.float32)
    v_all = jnp.dot(v_ref[...].astype(mm), wv_ref[...],
                    preferred_element_type=jnp.float32) + bv_ref[...]

    # Hoisted casts: one per (rows, D) tensor, reused by all per-head slices.
    q_mm = q_all.astype(mm)
    k_mm = k_all.astype(mm)
    v_mm = v_all.astype(mm)

    # --- Raw scores per (batch, head): contract last dims (MXU-side transpose). ---
    # NOTE: static loops are fine at Bb*H = 8; switch to lax.fori_loop if Bb grows large.
    score_tiles = []
    for b in range(Bb):
        r0 = b * S
        for h in range(H):
            c0 = h * dh
            s_bh = lax.dot_general(
                q_mm[r0:r0 + S, c0:c0 + dh],
                k_mm[r0:r0 + S, c0:c0 + dh],
                (((1,), (1,)), ((), ())),
                preferred_element_type=jnp.float32)          # (S, S) f32
            score_tiles.append(s_bh)

    # --- One fused softmax across all (batch, head) tiles: (Bb*H*S, S) f32. ---
    scores = jnp.concatenate(score_tiles, axis=0)
    scores = scores - jnp.max(scores, axis=-1, keepdims=True)
    e = jnp.exp(scores)
    attn = (e * pl.reciprocal(jnp.sum(e, axis=-1, keepdims=True),
                              approx=True)).astype(mm)
    # TODO(synk): nn.Dropout on attention omitted (eval-mode identity; PyTorch RNG not reproduced).
    # TODO(synk): optional attention `mask` argument not implemented (mask=None path only).

    # --- Context per (batch, head), reassembled head-major to (rows, D). ---
    ctx_rows = []
    for b in range(Bb):
        r0 = b * S
        head_ctx = []
        for h in range(H):
            t = b * H + h
            c0 = h * dh
            a_bh = attn[t * S:(t + 1) * S]                   # (S, S)
            head_ctx.append(jnp.dot(a_bh, v_mm[r0:r0 + S, c0:c0 + dh],
                                    preferred_element_type=jnp.float32))
        ctx_rows.append(jnp.concatenate(head_ctx, axis=-1))  # (S, D)
    ctx = jnp.concatenate(ctx_rows, axis=0).astype(mm)       # (rows, D)

    # --- Final projection: one matmul + bias; single full-tile store. ---
    # NOTE: D=32 < 128 lanes -> masked stores; at larger D keep the output lane
    # dim a multiple of 128 (or write a lane-dense slab and reshape outside).
    out = jnp.dot(ctx, wo_ref[...], preferred_element_type=jnp.float32) + bo_ref[...]
    o_ref[...] = out.astype(o_ref.dtype)


def _default_batch_block(batch, seq_len):
    """v5e/v6e (1 TC): one grid step. v7x (2 TCs): split only if each step gets
    enough rows (>= 256) to be worth the per-step overhead and duplicate weight DMA."""
    try:
        kind = jax.devices()[0].device_kind.lower()
    except Exception:
        kind = ""
    two_core = ("v7" in kind) or ("7x" in kind)
    if two_core and batch % 2 == 0 and (batch // 2) * seq_len >= 256:
        return batch // 2
    return batch


def multi_head_attention(q, k, v, params, heads=HEADS, batch_block=None):
    B, S, D = q.shape
    assert D % heads == 0
    dh = D // heads
    assert S % 8 == 0, "seq_len must be a multiple of 8 (f32 sublane tile)"
    wq, bq, wk, bk, wv, bv, wo, bo = params
    del bk  # mathematically dead under softmax shift-invariance (see kernel docstring)

    if batch_block is None:
        batch_block = _default_batch_block(B, S)
    assert B % batch_block == 0
    grid = (B // batch_block,)
    rows = batch_block * S
    mm = MATMUL_DTYPE
    scale = 1.0 / math.sqrt(dh)

    # Host-side weight prep (layout/scale plumbing only). Weights stored in the
    # MXU operand dtype; biases stay f32 (added to f32 accumulators).
    wq_s = (wq * scale).astype(mm)          # fold 1/sqrt(dh) into Wq
    bq_s = (bq * scale).astype(jnp.float32)  # ... and into bq
    wk_c = wk.astype(mm)
    wv_c = wv.astype(mm)
    wo_c = wo.astype(mm)

    # Flatten batch into rows so one grid step covers several batch elements.
    q2 = q.reshape(B * S, D)
    k2 = k.reshape(B * S, D)
    v2 = v.reshape(B * S, D)

    seq_spec = pl.BlockSpec((rows, D), lambda i: (i, 0))
    w_spec = pl.BlockSpec((D, D), lambda i: (0, 0))
    b_spec = pl.BlockSpec((1, D), lambda i: (0, 0))
    # NOTE: weight/bias blocks are grid-invariant; with grid=(1,) (the default here)
    # there is no buffer rotation. For large grids, pipeline_mode=pl.Buffered(1)
    # (or a one-time DMA into scratch) would halve their VMEM footprint.

    out2 = pl.pallas_call(
        functools.partial(mha_kernel, seq_len=S, heads=heads),
        out_shape=jax.ShapeDtypeStruct((B * S, D), q.dtype),
        grid_spec=pltpu.PrefetchScalarGridSpec(
            num_scalar_prefetch=0,
            grid=grid,
            in_specs=[seq_spec, seq_spec, seq_spec,
                      w_spec, b_spec, w_spec, w_spec, b_spec, w_spec, b_spec],
            out_specs=seq_spec,
        ),
        compiler_params=pltpu.CompilerParams(dimension_semantics=("parallel",)),
    )(q2, k2, v2, wq_s, bq_s, wk_c, wv_c, bv, wo_c, bo)
    return out2.reshape(B, S, D)


def init_linear(key, d_in, d_out):
    # PyTorch nn.Linear default init: U(-1/sqrt(d_in), 1/sqrt(d_in)) for W and b.
    kw, kb = jax.random.split(key)
    bound = 1.0 / math.sqrt(d_in)
    # store weight already transposed: (d_in, d_out)
    w = jax.random.uniform(kw, (d_in, d_out), jnp.float32, -bound, bound)
    b = jax.random.uniform(kb, (1, d_out), jnp.float32, -bound, bound)
    return w, b


def reference(q, k, v, params, heads):
    """Pure-JAX mirror of the PyTorch module forward (includes bk, exact f32)."""
    wq, bq, wk, bk, wv, bv, wo, bo = params
    B, S, D = q.shape
    dh = D // heads

    def split_heads(x):  # (B, S, D) -> (B, H, S, dh)
        return x.reshape(B, S, heads, dh).transpose(0, 2, 1, 3)

    qp = split_heads(q @ wq + bq)
    kp = split_heads(k @ wk + bk)
    vp = split_heads(v @ wv + bv)
    scores = jnp.einsum("bhqd,bhkd->bhqk", qp, kp) / math.sqrt(dh)
    attn = jax.nn.softmax(scores, axis=-1)
    ctx = jnp.einsum("bhqk,bhkd->bhqd", attn, vp)
    ctx = ctx.transpose(0, 2, 1, 3).reshape(B, S, D)
    return ctx @ wo + bo


if __name__ == "__main__":
    B, S, D = 2, 8, 32  # batch, seq, d_model; heads_count = 4 -> d_head = 8

    key = jax.random.PRNGKey(0)
    kq, kk, kv, k1, k2, k3, k4 = jax.random.split(key, 7)

    q = jax.random.normal(kq, (B, S, D), jnp.float32)
    k = jax.random.normal(kk, (B, S, D), jnp.float32)
    v = jax.random.normal(kv, (B, S, D), jnp.float32)

    params = (*init_linear(k1, D, D),   # query_projection
              *init_linear(k2, D, D),   # key_projection
              *init_linear(k3, D, D),   # value_projection
              *init_linear(k4, D, D))   # final_projection

    out = multi_head_attention(q, k, v, params)
    out = jax.block_until_ready(out)

    ref = reference(q, k, v, params, HEADS)
    assert out.shape == (B, S, D)
    # bf16 MXU operands with f32 accumulation + approx reciprocal -> relaxed tolerance.
    assert jnp.allclose(out, ref, atol=3e-2, rtol=3e-2), "mismatch vs. JAX reference"

    print("KERNEL_OK")
</pallas_src>

<mosaic_0001>
module attributes {stable_mosaic.version = 11 : i64} {
  func.func @mha_kernel(%arg0: i32, %arg1: memref<16x32xf32, #tpu.memory_space<vmem>>, %arg2: memref<16x32xf32, #tpu.memory_space<vmem>>, %arg3: memref<16x32xf32, #tpu.memory_space<vmem>>, %arg4: memref<32x32xbf16, #tpu.memory_space<vmem>>, %arg5: memref<1x32xf32, #tpu.memory_space<vmem>>, %arg6: memref<32x32xbf16, #tpu.memory_space<vmem>>, %arg7: memref<32x32xbf16, #tpu.memory_space<vmem>>, %arg8: memref<1x32xf32, #tpu.memory_space<vmem>>, %arg9: memref<32x32xbf16, #tpu.memory_space<vmem>>, %arg10: memref<1x32xf32, #tpu.memory_space<vmem>>, %arg11: memref<16x32xf32, #tpu.memory_space<vmem>>) attributes {dimension_semantics = [#tpu.dimension_semantics<parallel>], iteration_bounds = array<i64: 1>, scalar_prefetch = 0 : i64, scratch_operands = 0 : i64, tpu.core_type = #tpu.core_type<tc>, window_params = [{transform_indices = @transform_0, window_bounds = array<i64: 16, 32>}, {transform_indices = @transform_1, window_bounds = array<i64: 16, 32>}, {transform_indices = @transform_2, window_bounds = array<i64: 16, 32>}, {pipeline_mode = #tpu.pipeline_mode<synchronous>, transform_indices = @transform_3, window_bounds = array<i64: 32, 32>}, {pipeline_mode = #tpu.pipeline_mode<synchronous>, transform_indices = @transform_4, window_bounds = array<i64: 1, 32>}, {pipeline_mode = #tpu.pipeline_mode<synchronous>, transform_indices = @transform_5, window_bounds = array<i64: 32, 32>}, {pipeline_mode = #tpu.pipeline_mode<synchronous>, transform_indices = @transform_6, window_bounds = array<i64: 32, 32>}, {pipeline_mode = #tpu.pipeline_mode<synchronous>, transform_indices = @transform_7, window_bounds = array<i64: 1, 32>}, {pipeline_mode = #tpu.pipeline_mode<synchronous>, transform_indices = @transform_8, window_bounds = array<i64: 32, 32>}, {pipeline_mode = #tpu.pipeline_mode<synchronous>, transform_indices = @transform_9, window_bounds = array<i64: 1, 32>}, {transform_indices = @transform_10, window_bounds = array<i64: 16, 32>}]} {
    %c0 = arith.constant 0 : index
    %c0_0 = arith.constant 0 : index
    %0 = vector.load %arg1[%c0, %c0_0] : memref<16x32xf32, #tpu.memory_space<vmem>>, vector<16x32xf32>
    %1 = arith.truncf %0 : vector<16x32xf32> to vector<16x32xbf16>
    %c0_1 = arith.constant 0 : index
    %c0_2 = arith.constant 0 : index
    %2 = vector.load %arg4[%c0_1, %c0_2] : memref<32x32xbf16, #tpu.memory_space<vmem>>, vector<32x32xbf16>
    %cst = arith.constant dense<0.000000e+00> : vector<16x32xf32>
    %3 = tpu.matmul %1, %2, %cst {dimension_numbers = #tpu.dot_dimension_numbers<[1], [0], [0], [1], [0, 0, 1, 1], [], []>} : vector<16x32xbf16>, vector<32x32xbf16>, vector<16x32xf32> -> vector<16x32xf32>
    %c0_3 = arith.constant 0 : index
    %c0_4 = arith.constant 0 : index
    %4 = vector.load %arg5[%c0_3, %c0_4] : memref<1x32xf32, #tpu.memory_space<vmem>>, vector<1x32xf32>
    %5 = vector.broadcast %4 : vector<1x32xf32> to vector<16x32xf32>
    %6 = arith.addf %3, %5 : vector<16x32xf32>
    %c0_5 = arith.constant 0 : index
    %c0_6 = arith.constant 0 : index
    %7 = vector.load %arg2[%c0_5, %c0_6] : memref<16x32xf32, #tpu.memory_space<vmem>>, vector<16x32xf32>
    %8 = arith.truncf %7 : vector<16x32xf32> to vector<16x32xbf16>
    %c0_7 = arith.constant 0 : index
    %c0_8 = arith.constant 0 : index
    %9 = vector.load %arg6[%c0_7, %c0_8] : memref<32x32xbf16, #tpu.memory_space<vmem>>, vector<32x32xbf16>
    %cst_9 = arith.constant dense<0.000000e+00> : vector<16x32xf32>
    %10 = tpu.matmul %8, %9, %cst_9 {dimension_numbers = #tpu.dot_dimension_numbers<[1], [0], [0], [1], [0, 0, 1, 1], [], []>} : vector<16x32xbf16>, vector<32x32xbf16>, vector<16x32xf32> -> vector<16x32xf32>
    %c0_10 = arith.constant 0 : index
    %c0_11 = arith.constant 0 : index
    %11 = vector.load %arg3[%c0_10, %c0_11] : memref<16x32xf32, #tpu.memory_space<vmem>>, vector<16x32xf32>
    %12 = arith.truncf %11 : vector<16x32xf32> to vector<16x32xbf16>
    %c0_12 = arith.constant 0 : index
    %c0_13 = arith.constant 0 : index
    %13 = vector.load %arg7[%c0_12, %c0_13] : memref<32x32xbf16, #tpu.memory_space<vmem>>, vector<32x32xbf16>
    %cst_14 = arith.constant dense<0.000000e+00> : vector<16x32xf32>
    %14 = tpu.matmul %12, %13, %cst_14 {dimension_numbers = #tpu.dot_dimension_numbers<[1], [0], [0], [1], [0, 0, 1, 1], [], []>} : vector<16x32xbf16>, vector<32x32xbf16>, vector<16x32xf32> -> vector<16x32xf32>
    %c0_15 = arith.constant 0 : index
    %c0_16 = arith.constant 0 : index
    %15 = vector.load %arg8[%c0_15, %c0_16] : memref<1x32xf32, #tpu.memory_space<vmem>>, vector<1x32xf32>
    %16 = vector.broadcast %15 : vector<1x32xf32> to vector<16x32xf32>
    %17 = arith.addf %14, %16 : vector<16x32xf32>
    %18 = arith.truncf %6 : vector<16x32xf32> to vector<16x32xbf16>
    %19 = arith.truncf %10 : vector<16x32xf32> to vector<16x32xbf16>
    %20 = arith.truncf %17 : vector<16x32xf32> to vector<16x32xbf16>
    %21 = vector.extract_strided_slice %18 {offsets = [0, 0], sizes = [8, 8], strides = [1, 1]} : vector<16x32xbf16> to vector<8x8xbf16>
    %22 = vector.extract_strided_slice %19 {offsets = [0, 0], sizes = [8, 8], strides = [1, 1]} : vector<16x32xbf16> to vector<8x8xbf16>
    %cst_17 = arith.constant dense<0.000000e+00> : vector<8x8xf32>
    %23 = tpu.matmul %21, %22, %cst_17 {dimension_numbers = #tpu.dot_dimension_numbers<[1], [1], [0], [0], [0, 0, 1, 0], [], []>} : vector<8x8xbf16>, vector<8x8xbf16>, vector<8x8xf32> -> vector<8x8xf32>
    %24 = vector.extract_strided_slice %18 {offsets = [0, 8], sizes = [8, 8], strides = [1, 1]} : vector<16x32xbf16> to vector<8x8xbf16>
    %25 = vector.extract_strided_slice %19 {offsets = [0, 8], sizes = [8, 8], strides = [1, 1]} : vector<16x32xbf16> to vector<8x8xbf16>
    %cst_18 = arith.constant dense<0.000000e+00> : vector<8x8xf32>
    %26 = tpu.matmul %24, %25, %cst_18 {dimension_numbers = #tpu.dot_dimension_numbers<[1], [1], [0], [0], [0, 0, 1, 0], [], []>} : vector<8x8xbf16>, vector<8x8xbf16>, vector<8x8xf32> -> vector<8x8xf32>
    %27 = vector.extract_strided_slice %18 {offsets = [0, 16], sizes = [8, 8], strides = [1, 1]} : vector<16x32xbf16> to vector<8x8xbf16>
    %28 = vector.extract_strided_slice %19 {offsets = [0, 16], sizes = [8, 8], strides = [1, 1]} : vector<16x32xbf16> to vector<8x8xbf16>
    %cst_19 = arith.constant dense<0.000000e+00> : vector<8x8xf32>
    %29 = tpu.matmul %27, %28, %cst_19 {dimension_numbers = #tpu.dot_dimension_numbers<[1], [1], [0], [0], [0, 0, 1, 0], [], []>} : vector<8x8xbf16>, vector<8x8xbf16>, vector<8x8xf32> -> vector<8x8xf32>
    %30 = vector.extract_strided_slice %18 {offsets = [0, 24], sizes = [8, 8], strides = [1, 1]} : vector<16x32xbf16> to vector<8x8xbf16>
    %31 = vector.extract_strided_slice %19 {offsets = [0, 24], sizes = [8, 8], strides = [1, 1]} : vector<16x32xbf16> to vector<8x8xbf16>
    %cst_20 = arith.constant dense<0.000000e+00> : vector<8x8xf32>
    %32 = tpu.matmul %30, %31, %cst_20 {dimension_numbers = #tpu.dot_dimension_numbers<[1], [1], [0], [0], [0, 0, 1, 0], [], []>} : vector<8x8xbf16>, vector<8x8xbf16>, vector<8x8xf32> -> vector<8x8xf32>
    %33 = vector.extract_strided_slice %18 {offsets = [8, 0], sizes = [8, 8], strides = [1, 1]} : vector<16x32xbf16> to vector<8x8xbf16>
    %34 = vector.extract_strided_slice %19 {offsets = [8, 0], sizes = [8, 8], strides = [1, 1]} : vector<16x32xbf16> to vector<8x8xbf16>
    %cst_21 = arith.constant dense<0.000000e+00> : vector<8x8xf32>
    %35 = tpu.matmul %33, %34, %cst_21 {dimension_numbers = #tpu.dot_dimension_numbers<[1], [1], [0], [0], [0, 0, 1, 0], [], []>} : vector<8x8xbf16>, vector<8x8xbf16>, vector<8x8xf32> -> vector<8x8xf32>
    %36 = vector.extract_strided_slice %18 {offsets = [8, 8], sizes = [8, 8], strides = [1, 1]} : vector<16x32xbf16> to vector<8x8xbf16>
    %37 = vector.extract_strided_slice %19 {offsets = [8, 8], sizes = [8, 8], strides = [1, 1]} : vector<16x32xbf16> to vector<8x8xbf16>
    %cst_22 = arith.constant dense<0.000000e+00> : vector<8x8xf32>
    %38 = tpu.matmul %36, %37, %cst_22 {dimension_numbers = #tpu.dot_dimension_numbers<[1], [1], [0], [0], [0, 0, 1, 0], [], []>} : vector<8x8xbf16>, vector<8x8xbf16>, vector<8x8xf32> -> vector<8x8xf32>
    %39 = vector.extract_strided_slice %18 {offsets = [8, 16], sizes = [8, 8], strides = [1, 1]} : vector<16x32xbf16> to vector<8x8xbf16>
    %40 = vector.extract_strided_slice %19 {offsets = [8, 16], sizes = [8, 8], strides = [1, 1]} : vector<16x32xbf16> to vector<8x8xbf16>
    %cst_23 = arith.constant dense<0.000000e+00> : vector<8x8xf32>
    %41 = tpu.matmul %39, %40, %cst_23 {dimension_numbers = #tpu.dot_dimension_numbers<[1], [1], [0], [0], [0, 0, 1, 0], [], []>} : vector<8x8xbf16>, vector<8x8xbf16>, vector<8x8xf32> -> vector<8x8xf32>
    %42 = vector.extract_strided_slice %18 {offsets = [8, 24], sizes = [8, 8], strides = [1, 1]} : vector<16x32xbf16> to vector<8x8xbf16>
    %43 = vector.extract_strided_slice %19 {offsets = [8, 24], sizes = [8, 8], strides = [1, 1]} : vector<16x32xbf16> to vector<8x8xbf16>
    %cst_24 = arith.constant dense<0.000000e+00> : vector<8x8xf32>
    %44 = tpu.matmul %42, %43, %cst_24 {dimension_numbers = #tpu.dot_dimension_numbers<[1], [1], [0], [0], [0, 0, 1, 0], [], []>} : vector<8x8xbf16>, vector<8x8xbf16>, vector<8x8xf32> -> vector<8x8xf32>
    %45 = tpu.concatenate %23, %26, %29, %32, %35, %38, %41, %44 in 0 : vector<8x8xf32>, vector<8x8xf32>, vector<8x8xf32>, vector<8x8xf32>, vector<8x8xf32>, vector<8x8xf32>, vector<8x8xf32>, vector<8x8xf32> -> vector<64x8xf32>
    %cst_25 = arith.constant dense<0xFF800000> : vector<64xf32>
    %46 = vector.multi_reduction <maximumf>, %45, %cst_25 [1] : vector<64x8xf32> to vector<64xf32>
    %47 = vector.shape_cast %46 : vector<64xf32> to vector<64x1xf32>
    %48 = vector.broadcast %47 : vector<64x1xf32> to vector<64x8xf32>
    %49 = arith.subf %45, %48 : vector<64x8xf32>
    %50 = math.exp %49 : vector<64x8xf32>
    %cst_26 = arith.constant dense<0.000000e+00> : vector<64xf32>
    %51 = vector.multi_reduction <add>, %50, %cst_26 [1] : vector<64x8xf32> to vector<64xf32>
    %52 = vector.shape_cast %51 : vector<64xf32> to vector<64x1xf32>
    %53 = tpu.reciprocal %52 {approx = true} : vector<64x1xf32> -> vector<64x1xf32>
    %54 = vector.broadcast %53 : vector<64x1xf32> to vector<64x8xf32>
    %55 = arith.mulf %50, %54 : vector<64x8xf32>
    %56 = arith.truncf %55 : vector<64x8xf32> to vector<64x8xbf16>
    %57 = vector.extract_strided_slice %56 {offsets = [0, 0], sizes = [8, 8], strides = [1, 1]} : vector<64x8xbf16> to vector<8x8xbf16>
    %58 = vector.extract_strided_slice %20 {offsets = [0, 0], sizes = [8, 8], strides = [1, 1]} : vector<16x32xbf16> to vector<8x8xbf16>
    %cst_27 = arith.constant dense<0.000000e+00> : vector<8x8xf32>
    %59 = tpu.matmul %57, %58, %cst_27 {dimension_numbers = #tpu.dot_dimension_numbers<[1], [0], [0], [1], [0, 0, 1, 1], [], []>} : vector<8x8xbf16>, vector<8x8xbf16>, vector<8x8xf32> -> vector<8x8xf32>
    %60 = vector.extract_strided_slice %56 {offsets = [8, 0], sizes = [8, 8], strides = [1, 1]} : vector<64x8xbf16> to vector<8x8xbf16>
    %61 = vector.extract_strided_slice %20 {offsets = [0, 8], sizes = [8, 8], strides = [1, 1]} : vector<16x32xbf16> to vector<8x8xbf16>
    %cst_28 = arith.constant dense<0.000000e+00> : vector<8x8xf32>
    %62 = tpu.matmul %60, %61, %cst_28 {dimension_numbers = #tpu.dot_dimension_numbers<[1], [0], [0], [1], [0, 0, 1, 1], [], []>} : vector<8x8xbf16>, vector<8x8xbf16>, vector<8x8xf32> -> vector<8x8xf32>
    %63 = vector.extract_strided_slice %56 {offsets = [16, 0], sizes = [8, 8], strides = [1, 1]} : vector<64x8xbf16> to vector<8x8xbf16>
    %64 = vector.extract_strided_slice %20 {offsets = [0, 16], sizes = [8, 8], strides = [1, 1]} : vector<16x32xbf16> to vector<8x8xbf16>
    %cst_29 = arith.constant dense<0.000000e+00> : vector<8x8xf32>
    %65 = tpu.matmul %63, %64, %cst_29 {dimension_numbers = #tpu.dot_dimension_numbers<[1], [0], [0], [1], [0, 0, 1, 1], [], []>} : vector<8x8xbf16>, vector<8x8xbf16>, vector<8x8xf32> -> vector<8x8xf32>
    %66 = vector.extract_strided_slice %56 {offsets = [24, 0], sizes = [8, 8], strides = [1, 1]} : vector<64x8xbf16> to vector<8x8xbf16>
    %67 = vector.extract_strided_slice %20 {offsets = [0, 24], sizes = [8, 8], strides = [1, 1]} : vector<16x32xbf16> to vector<8x8xbf16>
    %cst_30 = arith.constant dense<0.000000e+00> : vector<8x8xf32>
    %68 = tpu.matmul %66, %67, %cst_30 {dimension_numbers = #tpu.dot_dimension_numbers<[1], [0], [0], [1], [0, 0, 1, 1], [], []>} : vector<8x8xbf16>, vector<8x8xbf16>, vector<8x8xf32> -> vector<8x8xf32>
    %69 = tpu.concatenate %59, %62, %65, %68 in 1 : vector<8x8xf32>, vector<8x8xf32>, vector<8x8xf32>, vector<8x8xf32> -> vector<8x32xf32>
    %70 = vector.extract_strided_slice %56 {offsets = [32, 0], sizes = [8, 8], strides = [1, 1]} : vector<64x8xbf16> to vector<8x8xbf16>
    %71 = vector.extract_strided_slice %20 {offsets = [8, 0], sizes = [8, 8], strides = [1, 1]} : vector<16x32xbf16> to vector<8x8xbf16>
    %cst_31 = arith.constant dense<0.000000e+00> : vector<8x8xf32>
    %72 = tpu.matmul %70, %71, %cst_31 {dimension_numbers = #tpu.dot_dimension_numbers<[1], [0], [0], [1], [0, 0, 1, 1], [], []>} : vector<8x8xbf16>, vector<8x8xbf16>, vector<8x8xf32> -> vector<8x8xf32>
    %73 = vector.extract_strided_slice %56 {offsets = [40, 0], sizes = [8, 8], strides = [1, 1]} : vector<64x8xbf16> to vector<8x8xbf16>
    %74 = vector.extract_strided_slice %20 {offsets = [8, 8], sizes = [8, 8], strides = [1, 1]} : vector<16x32xbf16> to vector<8x8xbf16>
    %cst_32 = arith.constant dense<0.000000e+00> : vector<8x8xf32>
    %75 = tpu.matmul %73, %74, %cst_32 {dimension_numbers = #tpu.dot_dimension_numbers<[1], [0], [0], [1], [0, 0, 1, 1], [], []>} : vector<8x8xbf16>, vector<8x8xbf16>, vector<8x8xf32> -> vector<8x8xf32>
    %76 = vector.extract_strided_slice %56 {offsets = [48, 0], sizes = [8, 8], strides = [1, 1]} : vector<64x8xbf16> to vector<8x8xbf16>
    %77 = vector.extract_strided_slice %20 {offsets = [8, 16], sizes = [8, 8], strides = [1, 1]} : vector<16x32xbf16> to vector<8x8xbf16>
    %cst_33 = arith.constant dense<0.000000e+00> : vector<8x8xf32>
    %78 = tpu.matmul %76, %77, %cst_33 {dimension_numbers = #tpu.dot_dimension_numbers<[1], [0], [0], [1], [0, 0, 1, 1], [], []>} : vector<8x8xbf16>, vector<8x8xbf16>, vector<8x8xf32> -> vector<8x8xf32>
    %79 = vector.extract_strided_slice %56 {offsets = [56, 0], sizes = [8, 8], strides = [1, 1]} : vector<64x8xbf16> to vector<8x8xbf16>
    %80 = vector.extract_strided_slice %20 {offsets = [8, 24], sizes = [8, 8], strides = [1, 1]} : vector<16x32xbf16> to vector<8x8xbf16>
    %cst_34 = arith.constant dense<0.000000e+00> : vector<8x8xf32>
    %81 = tpu.matmul %79, %80, %cst_34 {dimension_numbers = #tpu.dot_dimension_numbers<[1], [0], [0], [1], [0, 0, 1, 1], [], []>} : vector<8x8xbf16>, vector<8x8xbf16>, vector<8x8xf32> -> vector<8x8xf32>
    %82 = tpu.concatenate %72, %75, %78, %81 in 1 : vector<8x8xf32>, vector<8x8xf32>, vector<8x8xf32>, vector<8x8xf32> -> vector<8x32xf32>
    %83 = tpu.concatenate %69, %82 in 0 : vector<8x32xf32>, vector<8x32xf32> -> vector<16x32xf32>
    %84 = arith.truncf %83 : vector<16x32xf32> to vector<16x32xbf16>
    %c0_35 = arith.constant 0 : index
    %c0_36 = arith.constant 0 : index
    %85 = vector.load %arg9[%c0_35, %c0_36] : memref<32x32xbf16, #tpu.memory_space<vmem>>, vector<32x32xbf16>
    %cst_37 = arith.constant dense<0.000000e+00> : vector<16x32xf32>
    %86 = tpu.matmul %84, %85, %cst_37 {dimension_numbers = #tpu.dot_dimension_numbers<[1], [0], [0], [1], [0, 0, 1, 1], [], []>} : vector<16x32xbf16>, vector<32x32xbf16>, vector<16x32xf32> -> vector<16x32xf32>
    %c0_38 = arith.constant 0 : index
    %c0_39 = arith.constant 0 : index
    %87 = vector.load %arg10[%c0_38, %c0_39] : memref<1x32xf32, #tpu.memory_space<vmem>>, vector<1x32xf32>
    %88 = vector.broadcast %87 : vector<1x32xf32> to vector<16x32xf32>
    %89 = arith.addf %86, %88 : vector<16x32xf32>
    %c0_40 = arith.constant 0 : index
    %c0_41 = arith.constant 0 : index
    %90 = vector.load %arg11[%c0_40, %c0_41] : memref<16x32xf32, #tpu.memory_space<vmem>>, vector<16x32xf32>
    tpu.vector_store %arg11[%c0_40, %c0_41], %89 {strides = array<i32>} : memref<16x32xf32, #tpu.memory_space<vmem>>, vector<16x32xf32>,
    return
  }
  func.func @transform_0(%arg0: i32) -> (i32, i32) {
    %c0_i32 = arith.constant 0 : i32
    %c0_i32_0 = arith.constant 0 : i32
    return %arg0, %c0_i32 : i32, i32
  }
  func.func @transform_1(%arg0: i32) -> (i32, i32) {
    %c0_i32 = arith.constant 0 : i32
    %c0_i32_0 = arith.constant 0 : i32
    return %arg0, %c0_i32 : i32, i32
  }
  func.func @transform_2(%arg0: i32) -> (i32, i32) {
    %c0_i32 = arith.constant 0 : i32
    %c0_i32_0 = arith.constant 0 : i32
    return %arg0, %c0_i32 : i32, i32
  }
  func.func @transform_3(%arg0: i32) -> (i32, i32) {
    %c0_i32 = arith.constant 0 : i32
    %c0_i32_0 = arith.constant 0 : i32
    %c0_i32_1 = arith.constant 0 : i32
    return %c0_i32, %c0_i32_0 : i32, i32
  }
  func.func @transform_4(%arg0: i32) -> (i32, i32) {
    %c0_i32 = arith.constant 0 : i32
    %c0_i32_0 = arith.constant 0 : i32
    %c0_i32_1 = arith.constant 0 : i32
    return %c0_i32, %c0_i32_0 : i32, i32
  }
  func.func @transform_5(%arg0: i32) -> (i32, i32) {
    %c0_i32 = arith.constant 0 : i32
    %c0_i32_0 = arith.constant 0 : i32
    %c0_i32_1 = arith.constant 0 : i32
    return %c0_i32, %c0_i32_0 : i32, i32
  }
  func.func @transform_6(%arg0: i32) -> (i32, i32) {
    %c0_i32 = arith.constant 0 : i32
    %c0_i32_0 = arith.constant 0 : i32
    %c0_i32_1 = arith.constant 0 : i32
    return %c0_i32, %c0_i32_0 : i32, i32
  }
  func.func @transform_7(%arg0: i32) -> (i32, i32) {
    %c0_i32 = arith.constant 0 : i32
    %c0_i32_0 = arith.constant 0 : i32
    %c0_i32_1 = arith.constant 0 : i32
    return %c0_i32, %c0_i32_0 : i32, i32
  }
  func.func @transform_8(%arg0: i32) -> (i32, i32) {
    %c0_i32 = arith.constant 0 : i32
    %c0_i32_0 = arith.constant 0 : i32
    %c0_i32_1 = arith.constant 0 : i32
    return %c0_i32, %c0_i32_0 : i32, i32
  }
  func.func @transform_9(%arg0: i32) -> (i32, i32) {
    %c0_i32 = arith.constant 0 : i32
    %c0_i32_0 = arith.constant 0 : i32
    %c0_i32_1 = arith.constant 0 : i32
    return %c0_i32, %c0_i32_0 : i32, i32
  }
  func.func @transform_10(%arg0: i32) -> (i32, i32) {
    %c0_i32 = arith.constant 0 : i32
    %c0_i32_0 = arith.constant 0 : i32
    return %arg0, %c0_i32 : i32, i32
  }
}

</mosaic_0001>

<llo_original>
// kernel: tpu_custom_call.1
$region0: #{tpu_custom_call.1}
  #allocation0 [shape = 'u32[]', space=smem, size = 0x4, offset = 0x4, fixed_abs, tag = 'smem constant byte address 0x4 - core index']
  #allocation1 [shape = 'u32[144,128]{1,0:T(1,128)}', space=vmem, size = 0x12000, scoped, tag = 'internal scratch']
  %s0 = inlined_call_operand.hbm [shape: f32[16,32], index: 0, kind: input, shape index: {}]
  %s1 = inlined_call_operand.hbm [shape: f32[16,32], index: 1, kind: input, shape index: {}]
  %s2 = inlined_call_operand.hbm [shape: f32[16,32], index: 2, kind: input, shape index: {}]
  %s3 = inlined_call_operand.hbm [shape: bf16[32,32], index: 3, kind: input, shape index: {}]
  %s4 = inlined_call_operand.vmem [shape: f32[1,32], index: 4, kind: input, shape index: {}]
  %s5 = inlined_call_operand.vmem [shape: bf16[32,32], index: 5, kind: input, shape index: {}]
  %s6 = inlined_call_operand.hbm [shape: bf16[32,32], index: 6, kind: input, shape index: {}]
  %s7 = inlined_call_operand.vmem [shape: f32[1,32], index: 7, kind: input, shape index: {}]
  %s8 = inlined_call_operand.hbm [shape: bf16[32,32], index: 8, kind: input, shape index: {}]
  %s9 = inlined_call_operand.vmem [shape: f32[1,32], index: 9, kind: input, shape index: {}]
  %s10 = inlined_call_operand.hbm [shape: f32[16,32], index: 10, kind: output, shape index: {}]
  %s11 = sld [smem:[#allocation0]]
  $region74: #{tpu_custom_call.1} parent=0
    _
  %s13 = ssub.s32 1, %s11
  %s14 = scalar_select 0, %s13, %s11
  $region1: #{tpu_custom_call.1} parent=0
    #allocation2 [shape = 'u8[8192]{0}', space=vmem, size = 0x2000, scoped, tag = 'input window, operand 0, single buffered']
    #allocation3 [shape = 's32[1]{0}', space=sflag, size = 0x4, scoped, tag = 'scoped memory for tpu_custom_call.1']
    #allocation4 [shape = 's32[1]{0}', space=sflag, size = 0x4, scoped, tag = 'scoped memory for tpu_custom_call.1']
    #allocation5 [shape = 'u8[8192]{0}', space=vmem, size = 0x2000, scoped, tag = 'input window, operand 1, single buffered']
    #allocation6 [shape = 's32[1]{0}', space=sflag, size = 0x4, scoped, tag = 'scoped memory for tpu_custom_call.1']
    #allocation7 [shape = 'u8[8192]{0}', space=vmem, size = 0x2000, scoped, tag = 'input window, operand 2, single buffered']
    #allocation8 [shape = 'u8[8192]{0}', space=vmem, size = 0x2000, scoped, tag = 'input window, operand 3, single buffered']
    #allocation9 [shape = 's32[1]{0}', space=sflag, size = 0x4, scoped, tag = 'scoped memory for tpu_custom_call.1']
    #allocation10 [shape = 'u8[8192]{0}', space=vmem, size = 0x2000, scoped, tag = 'input window, operand 6, single buffered']
    #allocation11 [shape = 'u8[8192]{0}', space=vmem, size = 0x2000, scoped, tag = 'input window, operand 8, single buffered']
    #allocation12 [shape = 's32[1]{0}', space=sflag, size = 0x4, scoped, tag = 'scoped memory for tpu_custom_call.1']
    #allocation13 [shape = 'u8[8192]{0}', space=vmem, size = 0x2000, scoped, tag = 'output window, operand 0, single buffered']
    %15 = vsyncpa [#allocation3], 0
    %16 = vsyncpa [#allocation6], 0
    %17 = vsyncpa [#allocation9], 0
    %18 = vsyncpa [#allocation12], 0
    %19 = vsyncpa [#allocation4], 0
    // Predicated region
    $region2: #{tpu_custom_call.1} parent=1 // pred_check
      _
    $region3: #{tpu_custom_call.1} parent=1 // pred_check_branch
      %21 = sbr.rel (0) target = $region5
    $region4: #{tpu_custom_call.1} parent=1 // pred_region
      %s23 = ssub.s32 256, 256
      %24 = vsyncadd [#allocation3], %s23
      %s25 = sshll.u32 [#allocation2], 4
      %s26 = int_to_ptr.vmem [resolvable:$true] %s25
      %31 = dma.hbm_to_vmem [thread:$0]  %s0, 256, %s26, [#allocation3], 128, 128, 8
    $region5: #{tpu_custom_call.1} parent=1 // pred_fallthru
      _
    // Predicated region
    $region6: #{tpu_custom_call.1} parent=1 // pred_check
      _
    $region7: #{tpu_custom_call.1} parent=1 // pred_check_branch
      %33 = sbr.rel (0) target = $region9
    $region8: #{tpu_custom_call.1} parent=1 // pred_region
      %s35 = ssub.s32 256, 256
      %36 = vsyncadd [#allocation6], %s35
      %s37 = sshll.u32 [#allocation5], 4
      %s38 = int_to_ptr.vmem [resolvable:$true] %s37
      %43 = dma.hbm_to_vmem [thread:$0]  %s1, 256, %s38, [#allocation6], 128, 128, 8
    $region9: #{tpu_custom_call.1} parent=1 // pred_fallthru
      _
    // Predicated region
    $region10: #{tpu_custom_call.1} parent=1 // pred_check
      _
    $region11: #{tpu_custom_call.1} parent=1 // pred_check_branch
      %45 = sbr.rel (0) target = $region13
    $region12: #{tpu_custom_call.1} parent=1 // pred_region
      %s47 = ssub.s32 256, 256
      %48 = vsyncadd [#allocation6], %s47
      %s49 = sshll.u32 [#allocation7], 4
      %s50 = int_to_ptr.vmem [resolvable:$true] %s49
      %55 = dma.hbm_to_vmem [thread:$0]  %s2, 256, %s50, [#allocation6], 128, 128, 8
    $region13: #{tpu_custom_call.1} parent=1 // pred_fallthru
      _
    // Predicated region
    $region14: #{tpu_custom_call.1} parent=1 // pred_check
      _
    $region15: #{tpu_custom_call.1} parent=1 // pred_check_branch
      %57 = sbr.rel (0) target = $region17
    $region16: #{tpu_custom_call.1} parent=1 // pred_region
      %s59 = ssub.s32 256, 256
      %60 = vsyncadd [#allocation9], %s59
      %s61 = sshll.u32 [#allocation8], 4
      %s62 = int_to_ptr.vmem [resolvable:$true] %s61
      %67 = dma.hbm_to_vmem [thread:$0]  %s3, 256, %s62, [#allocation9], 64, 64, 4
    $region17: #{tpu_custom_call.1} parent=1 // pred_fallthru
      _
    // Predicated region
    $region18: #{tpu_custom_call.1} parent=1 // pred_check
      _
    $region19: #{tpu_custom_call.1} parent=1 // pred_check_branch
      %69 = sbr.rel (0) target = $region21
    $region20: #{tpu_custom_call.1} parent=1 // pred_region
      _
    $region21: #{tpu_custom_call.1} parent=1 // pred_fallthru
      _
    // Predicated region
    $region22: #{tpu_custom_call.1} parent=1 // pred_check
      _
    $region23: #{tpu_custom_call.1} parent=1 // pred_check_branch
      %71 = sbr.rel (0) target = $region25
    $region24: #{tpu_custom_call.1} parent=1 // pred_region
      _
    $region25: #{tpu_custom_call.1} parent=1 // pred_fallthru
      _
    // Predicated region
    $region26: #{tpu_custom_call.1} parent=1 // pred_check
      _
    $region27: #{tpu_custom_call.1} parent=1 // pred_check_branch
      %73 = sbr.rel (0) target = $region29
    $region28: #{tpu_custom_call.1} parent=1 // pred_region
      %s75 = ssub.s32 256, 256
      %76 = vsyncadd [#allocation9], %s75
      %s77 = sshll.u32 [#allocation10], 4
      %s78 = int_to_ptr.vmem [resolvable:$true] %s77
      %83 = dma.hbm_to_vmem [thread:$0]  %s6, 256, %s78, [#allocation9], 64, 64, 4
    $region29: #{tpu_custom_call.1} parent=1 // pred_fallthru
      _
    // Predicated region
    $region30: #{tpu_custom_call.1} parent=1 // pred_check
      _
    $region31: #{tpu_custom_call.1} parent=1 // pred_check_branch
      %85 = sbr.rel (0) target = $region33
    $region32: #{tpu_custom_call.1} parent=1 // pred_region
      _
    $region33: #{tpu_custom_call.1} parent=1 // pred_fallthru
      _
    // Predicated region
    $region34: #{tpu_custom_call.1} parent=1 // pred_check
      _
    $region35: #{tpu_custom_call.1} parent=1 // pred_check_branch
      %87 = sbr.rel (0) target = $region37
    $region36: #{tpu_custom_call.1} parent=1 // pred_region
      %s89 = ssub.s32 256, 256
      %90 = vsyncadd [#allocation12], %s89
      %s91 = sshll.u32 [#allocation11], 4
      %s92 = int_to_ptr.vmem [resolvable:$true] %s91
      %97 = dma.hbm_to_vmem [thread:$0]  %s8, 256, %s92, [#allocation12], 64, 64, 4
    $region37: #{tpu_custom_call.1} parent=1 // pred_fallthru
      _
    // Predicated region
    $region38: #{tpu_custom_call.1} parent=1 // pred_check
      _
    $region39: #{tpu_custom_call.1} parent=1 // pred_check_branch
      %99 = sbr.rel (0) target = $region41
    $region40: #{tpu_custom_call.1} parent=1 // pred_region
      _
    $region41: #{tpu_custom_call.1} parent=1 // pred_fallthru
      _
    // Predicated region
    $region42: #{tpu_custom_call.1} parent=1 // pred_check
      _
    $region43: #{tpu_custom_call.1} parent=1 // pred_check_branch
      %101 = sbr.rel (0) target = $region45
    $region44: #{tpu_custom_call.1} parent=1 // pred_region
      %102 = dma.done [#allocation3], 256
    $region45: #{tpu_custom_call.1} parent=1 // pred_fallthru
      _
    // Predicated region
    $region46: #{tpu_custom_call.1} parent=1 // pred_check
      _
    $region47: #{tpu_custom_call.1} parent=1 // pred_check_branch
      %104 = sbr.rel (0) target = $region49
    $region48: #{tpu_custom_call.1} parent=1 // pred_region
      %105 = dma.done [#allocation6], 256
    $region49: #{tpu_custom_call.1} parent=1 // pred_fallthru
      _
    // Predicated region
    $region50: #{tpu_custom_call.1} parent=1 // pred_check
      _
    $region51: #{tpu_custom_call.1} parent=1 // pred_check_branch
      %107 = sbr.rel (0) target = $region53
    $region52: #{tpu_custom_call.1} parent=1 // pred_region
      %108 = dma.done [#allocation6], 256
    $region53: #{tpu_custom_call.1} parent=1 // pred_fallthru
      _
    // Predicated region
    $region54: #{tpu_custom_call.1} parent=1 // pred_check
      _
    $region55: #{tpu_custom_call.1} parent=1 // pred_check_branch
      %110 = sbr.rel (0) target = $region57
    $region56: #{tpu_custom_call.1} parent=1 // pred_region
      %111 = dma.done [#allocation9], 256
    $region57: #{tpu_custom_call.1} parent=1 // pred_fallthru
      _
    // Predicated region
    $region58: #{tpu_custom_call.1} parent=1 // pred_check
      _
    $region59: #{tpu_custom_call.1} parent=1 // pred_check_branch
      %113 = sbr.rel (0) target = $region61
    $region60: #{tpu_custom_call.1} parent=1 // pred_region
      %114 = dma.done [#allocation9], 256
    $region61: #{tpu_custom_call.1} parent=1 // pred_fallthru
      _
    // Predicated region
    $region62: #{tpu_custom_call.1} parent=1 // pred_check
      _
    $region63: #{tpu_custom_call.1} parent=1 // pred_check_branch
      %116 = sbr.rel (0) target = $region65
    $region64: #{tpu_custom_call.1} parent=1 // pred_region
      %117 = dma.done [#allocation12], 256
    $region65: #{tpu_custom_call.1} parent=1 // pred_fallthru
      _
    %v119 = vld [vmem:[#allocation2] sm:$0xff]
    %v120 = vld [vmem:[#allocation2 + $0x8] sm:$0xff]
    %v121 = vpack.c.bf16 %v120, %v119
    %v122 = vld [vmem:[#allocation8] sm:$0xf]
    %v123 = vld [vmem:[#allocation8 + $0x4] sm:$0xf]
    %v124 = vld [vmem:[#allocation8 + $0x8] sm:$0xf]
    %v125 = vld [vmem:[#allocation8 + $0xc] sm:$0xf]
    %v126 = vld [vmem:[%s4] sm:$0x1]
    %v128 = vlaneseq
    %v129 = vshrl.u32 %v128, 7
    %v130 = vsub.s32 0, %v129
    %v131 = vrot.slane %v126, %v130
    %v137 = vunpack.c.l.b16 %v122
    %v138 = vunpack.c.l.b16 %v123
    %v139 = vunpack.c.l.b16 %v124
    %v140 = vunpack.c.l.b16 %v125
    %v141 = vpack.c.b16 %v138, %v137
    %v142 = vpack.c.b16 %v140, %v139
    %vm145 = vcmask 261120
    %v147 = vsel %vm145, %v121, 0
    %149 = vmatprep.subr.bf16.mxu0 0
    %150 = vmatpush1.bf16.msra.mxu0 %v141
    %151 = vmatprep.subr.bf16.mxu0 0
    %152 = vmatpush1.bf16.msra.mxu0 %v142
    %153 = vmatprep.subr.bf16.mxu0 0
    %154 = vmatpush1.bf16.msra.mxu0 0
    %155 = vmatprep.subr.bf16.mxu0 0
    %156 = vmatpush1.bf16.msra.mxu0 0
    %157 = vmatprep.subr.bf16.mxu0 0
    %158 = vmatpush1.bf16.msra.mxu0 0
    %159 = vmatprep.subr.bf16.mxu0 0
    %160 = vmatpush1.bf16.msra.mxu0 0
    %161 = vmatprep.subr.bf16.mxu0 0
    %162 = vmatpush1.bf16.msra.mxu0 0
    %163 = vmatprep.subr.bf16.mxu0 0
    %164 = vmatpush1.bf16.msra.mxu0 0
    %165 = vmatprep.subr.bf16.mxu0 0
    %166 = vmatpush1.bf16.msra.mxu0 0
    %167 = vmatprep.subr.bf16.mxu0 0
    %168 = vmatpush1.bf16.msra.mxu0 0
    %169 = vmatprep.subr.bf16.mxu0 0
    %170 = vmatpush1.bf16.msra.mxu0 0
    %171 = vmatprep.subr.bf16.mxu0 0
    %172 = vmatpush1.bf16.msra.mxu0 0
    %173 = vmatprep.subr.bf16.mxu0 0
    %174 = vmatpush1.bf16.msra.mxu0 0
    %175 = vmatprep.subr.bf16.mxu0 0
    %176 = vmatpush1.bf16.msra.mxu0 0
    %177 = vmatprep.subr.bf16.mxu0 0
    %178 = vmatpush1.bf16.msra.mxu0 0
    %179 = vmatprep.subr.bf16.mxu0 0
    %180 = vmatpush1.bf16.msra.mxu0 0
    %181 = vmatprep.mubr.bf16.mxu0 0
    %182 = vmatmul.mubr.bf16.gmra.mrb[0].mxu0 %v147
    %v183 = vpop.f32.mrb[0].mxu0
    %v184 = vadd.f32 %v131, %v183
    %v185 = vpop.f32.mrb[0].mxu0
    %v186 = vpop.f32.mrb[0].mxu0
    %v187 = vadd.f32 %v131, %v186
    %v188 = vpop.f32.mrb[0].mxu0
    %189 = vdwg.mxu0
    %v190 = vld [vmem:[#allocation5] sm:$0xff]
    %v191 = vld [vmem:[#allocation5 + $0x8] sm:$0xff]
    %v192 = vpack.c.bf16 %v191, %v190
    %v193 = vld [vmem:[%s5] sm:$0xf]
    %v194 = vld [vmem:[%s5 + $0x4] sm:$0xf]
    %v195 = vld [vmem:[%s5 + $0x8] sm:$0xf]
    %v196 = vld [vmem:[%s5 + $0xc] sm:$0xf]
    %v201 = vunpack.c.l.b16 %v193
    %v202 = vunpack.c.l.b16 %v194
    %v203 = vunpack.c.l.b16 %v195
    %v204 = vunpack.c.l.b16 %v196
    %v205 = vpack.c.b16 %v202, %v201
    %v206 = vpack.c.b16 %v204, %v203
    %v210 = vsel %vm145, %v192, 0
    %212 = vmatprep.subr.bf16.mxu0 0
    %213 = vmatpush1.bf16.msra.mxu0 %v205
    %214 = vmatprep.subr.bf16.mxu0 0
    %215 = vmatpush1.bf16.msra.mxu0 %v206
    %216 = vmatprep.subr.bf16.mxu0 0
    %217 = vmatpush1.bf16.msra.mxu0 0
    %218 = vmatprep.subr.bf16.mxu0 0
    %219 = vmatpush1.bf16.msra.mxu0 0
    %220 = vmatprep.subr.bf16.mxu0 0
    %221 = vmatpush1.bf16.msra.mxu0 0
    %222 = vmatprep.subr.bf16.mxu0 0
    %223 = vmatpush1.bf16.msra.mxu0 0
    %224 = vmatprep.subr.bf16.mxu0 0
    %225 = vmatpush1.bf16.msra.mxu0 0
    %226 = vmatprep.subr.bf16.mxu0 0
    %227 = vmatpush1.bf16.msra.mxu0 0
    %228 = vmatprep.subr.bf16.mxu0 0
    %229 = vmatpush1.bf16.msra.mxu0 0
    %230 = vmatprep.subr.bf16.mxu0 0
    %231 = vmatpush1.bf16.msra.mxu0 0
    %232 = vmatprep.subr.bf16.mxu0 0
    %233 = vmatpush1.bf16.msra.mxu0 0
    %234 = vmatprep.subr.bf16.mxu0 0
    %235 = vmatpush1.bf16.msra.mxu0 0
    %236 = vmatprep.subr.bf16.mxu0 0
    %237 = vmatpush1.bf16.msra.mxu0 0
    %238 = vmatprep.subr.bf16.mxu0 0
    %239 = vmatpush1.bf16.msra.mxu0 0
    %240 = vmatprep.subr.bf16.mxu0 0
    %241 = vmatpush1.bf16.msra.mxu0 0
    %242 = vmatprep.subr.bf16.mxu0 0
    %243 = vmatpush1.bf16.msra.mxu0 0
    %244 = vmatprep.mubr.bf16.mxu0 0
    %245 = vmatmul.mubr.bf16.gmra.mrb[0].mxu0 %v210
    %v246 = vpop.f32.mrb[0].mxu0
    %v247 = vadd.f32 0.0, %v246
    %v248 = vpop.f32.mrb[0].mxu0
    %v249 = vpop.f32.mrb[0].mxu0
    %v250 = vadd.f32 0.0, %v249
    %v251 = vpop.f32.mrb[0].mxu0
    %252 = vdwg.mxu0
    %v253 = vld [vmem:[#allocation7] sm:$0xff]
    %v254 = vld [vmem:[#allocation7 + $0x8] sm:$0xff]
    %v255 = vpack.c.bf16 %v254, %v253
    %v256 = vld [vmem:[#allocation10] sm:$0xf]
    %v257 = vld [vmem:[#allocation10 + $0x4] sm:$0xf]
    %v258 = vld [vmem:[#allocation10 + $0x8] sm:$0xf]
    %v259 = vld [vmem:[#allocation10 + $0xc] sm:$0xf]
    %v260 = vld [vmem:[%s7] sm:$0x1]
    %v262 = vlaneseq
    %v263 = vshrl.u32 %v262, 7
    %v264 = vsub.s32 0, %v263
    %v265 = vrot.slane %v260, %v264
    %v271 = vunpack.c.l.b16 %v256
    %v272 = vunpack.c.l.b16 %v257
    %v273 = vunpack.c.l.b16 %v258
    %v274 = vunpack.c.l.b16 %v259
    %v275 = vpack.c.b16 %v272, %v271
    %v276 = vpack.c.b16 %v274, %v273
    %v280 = vsel %vm145, %v255, 0
    %282 = vmatprep.subr.bf16.mxu0 0
    %283 = vmatpush1.bf16.msra.mxu0 %v275
    %284 = vmatprep.subr.bf16.mxu0 0
    %285 = vmatpush1.bf16.msra.mxu0 %v276
    %286 = vmatprep.subr.bf16.mxu0 0
    %287 = vmatpush1.bf16.msra.mxu0 0
    %288 = vmatprep.subr.bf16.mxu0 0
    %289 = vmatpush1.bf16.msra.mxu0 0
    %290 = vmatprep.subr.bf16.mxu0 0
    %291 = vmatpush1.bf16.msra.mxu0 0
    %292 = vmatprep.subr.bf16.mxu0 0
    %293 = vmatpush1.bf16.msra.mxu0 0
    %294 = vmatprep.subr.bf16.mxu0 0
    %295 = vmatpush1.bf16.msra.mxu0 0
    %296 = vmatprep.subr.bf16.mxu0 0
    %297 = vmatpush1.bf16.msra.mxu0 0
    %298 = vmatprep.subr.bf16.mxu0 0
    %299 = vmatpush1.bf16.msra.mxu0 0
    %300 = vmatprep.subr.bf16.mxu0 0
    %301 = vmatpush1.bf16.msra.mxu0 0
    %302 = vmatprep.subr.bf16.mxu0 0
    %303 = vmatpush1.bf16.msra.mxu0 0
    %304 = vmatprep.subr.bf16.mxu0 0
    %305 = vmatpush1.bf16.msra.mxu0 0
    %306 = vmatprep.subr.bf16.mxu0 0
    %307 = vmatpush1.bf16.msra.mxu0 0
    %308 = vmatprep.subr.bf16.mxu0 0
    %309 = vmatpush1.bf16.msra.mxu0 0
    %310 = vmatprep.subr.bf16.mxu0 0
    %311 = vmatpush1.bf16.msra.mxu0 0
    %312 = vmatprep.subr.bf16.mxu0 0
    %313 = vmatpush1.bf16.msra.mxu0 0
    %314 = vmatprep.mubr.bf16.mxu0 0
    %315 = vmatmul.mubr.bf16.gmra.mrb[0].mxu0 %v280
    %v316 = vpop.f32.mrb[0].mxu0
    %v317 = vadd.f32 %v265, %v316
    %v318 = vpop.f32.mrb[0].mxu0
    %v319 = vpop.f32.mrb[0].mxu0
    %v320 = vadd.f32 %v265, %v319
    %v321 = vpop.f32.mrb[0].mxu0
    %322 = vdwg.mxu0
    %v323 = vpack.c.bf16 %v187, %v184
    %v324 = vpack.c.bf16 %v250, %v247
    %v325 = vpack.c.bf16 %v320, %v317
    %vm326 = vcmask 64512
    %v328 = vsel %vm326, %v323, 0
    %v331 = vsel %vm326, %v324, 0
    %333 = vmatprep.subr.bf16.mxu0 0
    %334 = vmatpush1.bf16.xpose.msra.mxu0 %v331
    %335 = vmatprep.subr.bf16.mxu0 0
    %336 = vmatpush1.bf16.xpose.msra.mxu0 0
    %337 = vmatprep.subr.bf16.mxu0 0
    %338 = vmatpush1.bf16.xpose.msra.mxu0 0
    %339 = vmatprep.subr.bf16.mxu0 0
    %340 = vmatpush1.bf16.xpose.msra.mxu0 0
    %341 = vmatprep.subr.bf16.mxu0 0
    %342 = vmatpush1.bf16.xpose.msra.mxu0 0
    %343 = vmatprep.subr.bf16.mxu0 0
    %344 = vmatpush1.bf16.xpose.msra.mxu0 0
    %345 = vmatprep.subr.bf16.mxu0 0
    %346 = vmatpush1.bf16.xpose.msra.mxu0 0
    %347 = vmatprep.subr.bf16.mxu0 0
    %348 = vmatpush1.bf16.xpose.msra.mxu0 0
    %349 = vmatprep.subr.bf16.mxu0 0
    %350 = vmatpush1.bf16.xpose.msra.mxu0 0
    %351 = vmatprep.subr.bf16.mxu0 0
    %352 = vmatpush1.bf16.xpose.msra.mxu0 0
    %353 = vmatprep.subr.bf16.mxu0 0
    %354 = vmatpush1.bf16.xpose.msra.mxu0 0
    %355 = vmatprep.subr.bf16.mxu0 0
    %356 = vmatpush1.bf16.xpose.msra.mxu0 0
    %357 = vmatprep.subr.bf16.mxu0 0
    %358 = vmatpush1.bf16.xpose.msra.mxu0 0
    %359 = vmatprep.subr.bf16.mxu0 0
    %360 = vmatpush1.bf16.xpose.msra.mxu0 0
    %361 = vmatprep.subr.bf16.mxu0 0
    %362 = vmatpush1.bf16.xpose.msra.mxu0 0
    %363 = vmatprep.subr.bf16.mxu0 0
    %364 = vmatpush1.bf16.xpose.msra.mxu0 0
    %365 = vmatprep.mubr.bf16.mxu0 0
    %366 = vmatmul.mubr.bf16.gmra.mrb[0].mxu0 %v328
    %v367 = vpop.f32.mrb[0].mxu0
    %v368 = vadd.f32 0.0, %v367
    %v369 = vpop.f32.mrb[0].mxu0
    %v370 = vpop.f32.mrb[0].mxu0
    %v371 = vpop.f32.mrb[0].mxu0
    %372 = vdwg.mxu0
    %374 = vrot.lane.b32.xlu0 %v323, 120
    %v375 = vpop.permute.xlu0 %374
    %377 = vrot.lane.b32.xlu0 %v324, 120
    %v378 = vpop.permute.xlu0 %377
    %v380 = vsel %vm326, %v375, 0
    %v383 = vsel %vm326, %v378, 0
    %385 = vmatprep.subr.bf16.mxu0 0
    %386 = vmatpush1.bf16.xpose.msra.mxu0 %v383
    %387 = vmatprep.subr.bf16.mxu0 0
    %388 = vmatpush1.bf16.xpose.msra.mxu0 0
    %389 = vmatprep.subr.bf16.mxu0 0
    %390 = vmatpush1.bf16.xpose.msra.mxu0 0
    %391 = vmatprep.subr.bf16.mxu0 0
    %392 = vmatpush1.bf16.xpose.msra.mxu0 0
    %393 = vmatprep.subr.bf16.mxu0 0
    %394 = vmatpush1.bf16.xpose.msra.mxu0 0
    %395 = vmatprep.subr.bf16.mxu0 0
    %396 = vmatpush1.bf16.xpose.msra.mxu0 0
    %397 = vmatprep.subr.bf16.mxu0 0
    %398 = vmatpush1.bf16.xpose.msra.mxu0 0
    %399 = vmatprep.subr.bf16.mxu0 0
    %400 = vmatpush1.bf16.xpose.msra.mxu0 0
    %401 = vmatprep.subr.bf16.mxu0 0
    %402 = vmatpush1.bf16.xpose.msra.mxu0 0
    %403 = vmatprep.subr.bf16.mxu0 0
    %404 = vmatpush1.bf16.xpose.msra.mxu0 0
    %405 = vmatprep.subr.bf16.mxu0 0
    %406 = vmatpush1.bf16.xpose.msra.mxu0 0
    %407 = vmatprep.subr.bf16.mxu0 0
    %408 = vmatpush1.bf16.xpose.msra.mxu0 0
    %409 = vmatprep.subr.bf16.mxu0 0
    %410 = vmatpush1.bf16.xpose.msra.mxu0 0
    %411 = vmatprep.subr.bf16.mxu0 0
    %412 = vmatpush1.bf16.xpose.msra.mxu0 0
    %413 = vmatprep.subr.bf16.mxu0 0
    %414 = vmatpush1.bf16.xpose.msra.mxu0 0
    %415 = vmatprep.subr.bf16.mxu0 0
    %416 = vmatpush1.bf16.xpose.msra.mxu0 0
    %417 = vmatprep.mubr.bf16.mxu0 0
    %418 = vmatmul.mubr.bf16.gmra.mrb[0].mxu0 %v380
    %v419 = vpop.f32.mrb[0].mxu0
    %v420 = vadd.f32 0.0, %v419
    %v421 = vpop.f32.mrb[0].mxu0
    %v422 = vpop.f32.mrb[0].mxu0
    %v423 = vpop.f32.mrb[0].mxu0
    %424 = vdwg.mxu0
    %425 = vrot.lane.b32.xlu0 %v323, 112
    %v426 = vpop.permute.xlu0 %425
    %427 = vrot.lane.b32.xlu0 %v324, 112
    %v428 = vpop.permute.xlu0 %427
    %v430 = vsel %vm326, %v426, 0
    %v433 = vsel %vm326, %v428, 0
    %435 = vmatprep.subr.bf16.mxu0 0
    %436 = vmatpush1.bf16.xpose.msra.mxu0 %v433
    %437 = vmatprep.subr.bf16.mxu0 0
    %438 = vmatpush1.bf16.xpose.msra.mxu0 0
    %439 = vmatprep.subr.bf16.mxu0 0
    %440 = vmatpush1.bf16.xpose.msra.mxu0 0
    %441 = vmatprep.subr.bf16.mxu0 0
    %442 = vmatpush1.bf16.xpose.msra.mxu0 0
    %443 = vmatprep.subr.bf16.mxu0 0
    %444 = vmatpush1.bf16.xpose.msra.mxu0 0
    %445 = vmatprep.subr.bf16.mxu0 0
    %446 = vmatpush1.bf16.xpose.msra.mxu0 0
    %447 = vmatprep.subr.bf16.mxu0 0
    %448 = vmatpush1.bf16.xpose.msra.mxu0 0
    %449 = vmatprep.subr.bf16.mxu0 0
    %450 = vmatpush1.bf16.xpose.msra.mxu0 0
    %451 = vmatprep.subr.bf16.mxu0 0
    %452 = vmatpush1.bf16.xpose.msra.mxu0 0
    %453 = vmatprep.subr.bf16.mxu0 0
    %454 = vmatpush1.bf16.xpose.msra.mxu0 0
    %455 = vmatprep.subr.bf16.mxu0 0
    %456 = vmatpush1.bf16.xpose.msra.mxu0 0
    %457 = vmatprep.subr.bf16.mxu0 0
    %458 = vmatpush1.bf16.xpose.msra.mxu0 0
    %459 = vmatprep.subr.bf16.mxu0 0
    %460 = vmatpush1.bf16.xpose.msra.mxu0 0
    %461 = vmatprep.subr.bf16.mxu0 0
    %462 = vmatpush1.bf16.xpose.msra.mxu0 0
    %463 = vmatprep.subr.bf16.mxu0 0
    %464 = vmatpush1.bf16.xpose.msra.mxu0 0
    %465 = vmatprep.subr.bf16.mxu0 0
    %466 = vmatpush1.bf16.xpose.msra.mxu0 0
    %467 = vmatprep.mubr.bf16.mxu0 0
    %468 = vmatmul.mubr.bf16.gmra.mrb[0].mxu0 %v430
    %v469 = vpop.f32.mrb[0].mxu0
    %v470 = vadd.f32 0.0, %v469
    %v471 = vpop.f32.mrb[0].mxu0
    %v472 = vpop.f32.mrb[0].mxu0
    %v473 = vpop.f32.mrb[0].mxu0
    %474 = vdwg.mxu0
    %475 = vrot.lane.b32.xlu0 %v323, 104
    %v476 = vpop.permute.xlu0 %475
    %477 = vrot.lane.b32.xlu0 %v324, 104
    %v478 = vpop.permute.xlu0 %477
    %v480 = vsel %vm326, %v476, 0
    %v483 = vsel %vm326, %v478, 0
    %485 = vmatprep.subr.bf16.mxu0 0
    %486 = vmatpush1.bf16.xpose.msra.mxu0 %v483
    %487 = vmatprep.subr.bf16.mxu0 0
    %488 = vmatpush1.bf16.xpose.msra.mxu0 0
    %489 = vmatprep.subr.bf16.mxu0 0
    %490 = vmatpush1.bf16.xpose.msra.mxu0 0
    %491 = vmatprep.subr.bf16.mxu0 0
    %492 = vmatpush1.bf16.xpose.msra.mxu0 0
    %493 = vmatprep.subr.bf16.mxu0 0
    %494 = vmatpush1.bf16.xpose.msra.mxu0 0
    %495 = vmatprep.subr.bf16.mxu0 0
    %496 = vmatpush1.bf16.xpose.msra.mxu0 0
    %497 = vmatprep.subr.bf16.mxu0 0
    %498 = vmatpush1.bf16.xpose.msra.mxu0 0
    %499 = vmatprep.subr.bf16.mxu0 0
    %500 = vmatpush1.bf16.xpose.msra.mxu0 0
    %501 = vmatprep.subr.bf16.mxu0 0
    %502 = vmatpush1.bf16.xpose.msra.mxu0 0
    %503 = vmatprep.subr.bf16.mxu0 0
    %504 = vmatpush1.bf16.xpose.msra.mxu0 0
    %505 = vmatprep.subr.bf16.mxu0 0
    %506 = vmatpush1.bf16.xpose.msra.mxu0 0
    %507 = vmatprep.subr.bf16.mxu0 0
    %508 = vmatpush1.bf16.xpose.msra.mxu0 0
    %509 = vmatprep.subr.bf16.mxu0 0
    %510 = vmatpush1.bf16.xpose.msra.mxu0 0
    %511 = vmatprep.subr.bf16.mxu0 0
    %512 = vmatpush1.bf16.xpose.msra.mxu0 0
    %513 = vmatprep.subr.bf16.mxu0 0
    %514 = vmatpush1.bf16.xpose.msra.mxu0 0
    %515 = vmatprep.subr.bf16.mxu0 0
    %516 = vmatpush1.bf16.xpose.msra.mxu0 0
    %517 = vmatprep.mubr.bf16.mxu0 0
    %518 = vmatmul.mubr.bf16.gmra.mrb[0].mxu0 %v480
    %v519 = vpop.f32.mrb[0].mxu0
    %v520 = vadd.f32 0.0, %v519
    %v521 = vpop.f32.mrb[0].mxu0
    %v522 = vpop.f32.mrb[0].mxu0
    %v523 = vpop.f32.mrb[0].mxu0
    %524 = vdwg.mxu0
    %v525 = vrot.slane %v323, 4
    %v526 = vrot.slane %v324, 4
    %v528 = vsel %vm326, %v525, 0
    %v531 = vsel %vm326, %v526, 0
    %533 = vmatprep.subr.bf16.mxu0 0
    %534 = vmatpush1.bf16.xpose.msra.mxu0 %v531
    %535 = vmatprep.subr.bf16.mxu0 0
    %536 = vmatpush1.bf16.xpose.msra.mxu0 0
    %537 = vmatprep.subr.bf16.mxu0 0
    %538 = vmatpush1.bf16.xpose.msra.mxu0 0
    %539 = vmatprep.subr.bf16.mxu0 0
    %540 = vmatpush1.bf16.xpose.msra.mxu0 0
    %541 = vmatprep.subr.bf16.mxu0 0
    %542 = vmatpush1.bf16.xpose.msra.mxu0 0
    %543 = vmatprep.subr.bf16.mxu0 0
    %544 = vmatpush1.bf16.xpose.msra.mxu0 0
    %545 = vmatprep.subr.bf16.mxu0 0
    %546 = vmatpush1.bf16.xpose.msra.mxu0 0
    %547 = vmatprep.subr.bf16.mxu0 0
    %548 = vmatpush1.bf16.xpose.msra.mxu0 0
    %549 = vmatprep.subr.bf16.mxu0 0
    %550 = vmatpush1.bf16.xpose.msra.mxu0 0
    %551 = vmatprep.subr.bf16.mxu0 0
    %552 = vmatpush1.bf16.xpose.msra.mxu0 0
    %553 = vmatprep.subr.bf16.mxu0 0
    %554 = vmatpush1.bf16.xpose.msra.mxu0 0
    %555 = vmatprep.subr.bf16.mxu0 0
    %556 = vmatpush1.bf16.xpose.msra.mxu0 0
    %557 = vmatprep.subr.bf16.mxu0 0
    %558 = vmatpush1.bf16.xpose.msra.mxu0 0
    %559 = vmatprep.subr.bf16.mxu0 0
    %560 = vmatpush1.bf16.xpose.msra.mxu0 0
    %561 = vmatprep.subr.bf16.mxu0 0
    %562 = vmatpush1.bf16.xpose.msra.mxu0 0
    %563 = vmatprep.subr.bf16.mxu0 0
    %564 = vmatpush1.bf16.xpose.msra.mxu0 0
    %565 = vmatprep.mubr.bf16.mxu0 0
    %566 = vmatmul.mubr.bf16.gmra.mrb[0].mxu0 %v528
    %v567 = vpop.f32.mrb[0].mxu0
    %v568 = vadd.f32 0.0, %v567
    %v569 = vpop.f32.mrb[0].mxu0
    %v570 = vpop.f32.mrb[0].mxu0
    %v571 = vpop.f32.mrb[0].mxu0
    %572 = vdwg.mxu0
    %573 = vrot.lane.b32.xlu0 %v525, 120
    %v574 = vpop.permute.xlu0 %573
    %575 = vrot.lane.b32.xlu0 %v526, 120
    %v576 = vpop.permute.xlu0 %575
    %v578 = vsel %vm326, %v574, 0
    %v581 = vsel %vm326, %v576, 0
    %583 = vmatprep.subr.bf16.mxu0 0
    %584 = vmatpush1.bf16.xpose.msra.mxu0 %v581
    %585 = vmatprep.subr.bf16.mxu0 0
    %586 = vmatpush1.bf16.xpose.msra.mxu0 0
    %587 = vmatprep.subr.bf16.mxu0 0
    %588 = vmatpush1.bf16.xpose.msra.mxu0 0
    %589 = vmatprep.subr.bf16.mxu0 0
    %590 = vmatpush1.bf16.xpose.msra.mxu0 0
    %591 = vmatprep.subr.bf16.mxu0 0
    %592 = vmatpush1.bf16.xpose.msra.mxu0 0
    %593 = vmatprep.subr.bf16.mxu0 0
    %594 = vmatpush1.bf16.xpose.msra.mxu0 0
    %595 = vmatprep.subr.bf16.mxu0 0
    %596 = vmatpush1.bf16.xpose.msra.mxu0 0
    %597 = vmatprep.subr.bf16.mxu0 0
    %598 = vmatpush1.bf16.xpose.msra.mxu0 0
    %599 = vmatprep.subr.bf16.mxu0 0
    %600 = vmatpush1.bf16.xpose.msra.mxu0 0
    %601 = vmatprep.subr.bf16.mxu0 0
    %602 = vmatpush1.bf16.xpose.msra.mxu0 0
    %603 = vmatprep.subr.bf16.mxu0 0
    %604 = vmatpush1.bf16.xpose.msra.mxu0 0
    %605 = vmatprep.subr.bf16.mxu0 0
    %606 = vmatpush1.bf16.xpose.msra.mxu0 0
    %607 = vmatprep.subr.bf16.mxu0 0
    %608 = vmatpush1.bf16.xpose.msra.mxu0 0
    %609 = vmatprep.subr.bf16.mxu0 0
    %610 = vmatpush1.bf16.xpose.msra.mxu0 0
    %611 = vmatprep.subr.bf16.mxu0 0
    %612 = vmatpush1.bf16.xpose.msra.mxu0 0
    %613 = vmatprep.subr.bf16.mxu0 0
    %614 = vmatpush1.bf16.xpose.msra.mxu0 0
    %615 = vmatprep.mubr.bf16.mxu0 0
    %616 = vmatmul.mubr.bf16.gmra.mrb[0].mxu0 %v578
    %v617 = vpop.f32.mrb[0].mxu0
    %v618 = vadd.f32 0.0, %v617
    %v619 = vpop.f32.mrb[0].mxu0
    %v620 = vpop.f32.mrb[0].mxu0
    %v621 = vpop.f32.mrb[0].mxu0
    %622 = vdwg.mxu0
    %623 = vrot.lane.b32.xlu0 %v525, 112
    %v624 = vpop.permute.xlu0 %623
    %625 = vrot.lane.b32.xlu0 %v526, 112
    %v626 = vpop.permute.xlu0 %625
    %v628 = vsel %vm326, %v624, 0
    %v631 = vsel %vm326, %v626, 0
    %633 = vmatprep.subr.bf16.mxu0 0
    %634 = vmatpush1.bf16.xpose.msra.mxu0 %v631
    %635 = vmatprep.subr.bf16.mxu0 0
    %636 = vmatpush1.bf16.xpose.msra.mxu0 0
    %637 = vmatprep.subr.bf16.mxu0 0
    %638 = vmatpush1.bf16.xpose.msra.mxu0 0
    %639 = vmatprep.subr.bf16.mxu0 0
    %640 = vmatpush1.bf16.xpose.msra.mxu0 0
    %641 = vmatprep.subr.bf16.mxu0 0
    %642 = vmatpush1.bf16.xpose.msra.mxu0 0
    %643 = vmatprep.subr.bf16.mxu0 0
    %644 = vmatpush1.bf16.xpose.msra.mxu0 0
    %645 = vmatprep.subr.bf16.mxu0 0
    %646 = vmatpush1.bf16.xpose.msra.mxu0 0
    %647 = vmatprep.subr.bf16.mxu0 0
    %648 = vmatpush1.bf16.xpose.msra.mxu0 0
    %649 = vmatprep.subr.bf16.mxu0 0
    %650 = vmatpush1.bf16.xpose.msra.mxu0 0
    %651 = vmatprep.subr.bf16.mxu0 0
    %652 = vmatpush1.bf16.xpose.msra.mxu0 0
    %653 = vmatprep.subr.bf16.mxu0 0
    %654 = vmatpush1.bf16.xpose.msra.mxu0 0
    %655 = vmatprep.subr.bf16.mxu0 0
    %656 = vmatpush1.bf16.xpose.msra.mxu0 0
    %657 = vmatprep.subr.bf16.mxu0 0
    %658 = vmatpush1.bf16.xpose.msra.mxu0 0
    %659 = vmatprep.subr.bf16.mxu0 0
    %660 = vmatpush1.bf16.xpose.msra.mxu0 0
    %661 = vmatprep.subr.bf16.mxu0 0
    %662 = vmatpush1.bf16.xpose.msra.mxu0 0
    %663 = vmatprep.subr.bf16.mxu0 0
    %664 = vmatpush1.bf16.xpose.msra.mxu0 0
    %665 = vmatprep.mubr.bf16.mxu0 0
    %666 = vmatmul.mubr.bf16.gmra.mrb[0].mxu0 %v628
    %v667 = vpop.f32.mrb[0].mxu0
    %v668 = vadd.f32 0.0, %v667
    %v669 = vpop.f32.mrb[0].mxu0
    %v670 = vpop.f32.mrb[0].mxu0
    %v671 = vpop.f32.mrb[0].mxu0
    %672 = vdwg.mxu0
    %673 = vrot.lane.b32.xlu0 %v525, 104
    %v674 = vpop.permute.xlu0 %673
    %675 = vrot.lane.b32.xlu0 %v526, 104
    %v676 = vpop.permute.xlu0 %675
    %v678 = vsel %vm326, %v674, 0
    %v681 = vsel %vm326, %v676, 0
    %683 = vmatprep.subr.bf16.mxu0 0
    %684 = vmatpush1.bf16.xpose.msra.mxu0 %v681
    %685 = vmatprep.subr.bf16.mxu0 0
    %686 = vmatpush1.bf16.xpose.msra.mxu0 0
    %687 = vmatprep.subr.bf16.mxu0 0
    %688 = vmatpush1.bf16.xpose.msra.mxu0 0
    %689 = vmatprep.subr.bf16.mxu0 0
    %690 = vmatpush1.bf16.xpose.msra.mxu0 0
    %691 = vmatprep.subr.bf16.mxu0 0
    %692 = vmatpush1.bf16.xpose.msra.mxu0 0
    %693 = vmatprep.subr.bf16.mxu0 0
    %694 = vmatpush1.bf16.xpose.msra.mxu0 0
    %695 = vmatprep.subr.bf16.mxu0 0
    %696 = vmatpush1.bf16.xpose.msra.mxu0 0
    %697 = vmatprep.subr.bf16.mxu0 0
    %698 = vmatpush1.bf16.xpose.msra.mxu0 0
    %699 = vmatprep.subr.bf16.mxu0 0
    %700 = vmatpush1.bf16.xpose.msra.mxu0 0
    %701 = vmatprep.subr.bf16.mxu0 0
    %702 = vmatpush1.bf16.xpose.msra.mxu0 0
    %703 = vmatprep.subr.bf16.mxu0 0
    %704 = vmatpush1.bf16.xpose.msra.mxu0 0
    %705 = vmatprep.subr.bf16.mxu0 0
    %706 = vmatpush1.bf16.xpose.msra.mxu0 0
    %707 = vmatprep.subr.bf16.mxu0 0
    %708 = vmatpush1.bf16.xpose.msra.mxu0 0
    %709 = vmatprep.subr.bf16.mxu0 0
    %710 = vmatpush1.bf16.xpose.msra.mxu0 0
    %711 = vmatprep.subr.bf16.mxu0 0
    %712 = vmatpush1.bf16.xpose.msra.mxu0 0
    %713 = vmatprep.subr.bf16.mxu0 0
    %714 = vmatpush1.bf16.xpose.msra.mxu0 0
    %715 = vmatprep.mubr.bf16.mxu0 0
    %716 = vmatmul.mubr.bf16.gmra.mrb[0].mxu0 %v678
    %v717 = vpop.f32.mrb[0].mxu0
    %v718 = vadd.f32 0.0, %v717
    %v719 = vpop.f32.mrb[0].mxu0
    %v720 = vpop.f32.mrb[0].mxu0
    %v721 = vpop.f32.mrb[0].mxu0
    %722 = vdwg.mxu0
    %v723 = vsel %vm326, %v368, -inf
    %724 = vmax.xlane.f32.xlu0 %v723
    %v725 = vpop.xlane.xlu0 %724
    %v726 = vsel %vm326, %v420, -inf
    %727 = vmax.xlane.f32.xlu0 %v726
    %v728 = vpop.xlane.xlu0 %727
    %v729 = vsel %vm326, %v470, -inf
    %730 = vmax.xlane.f32.xlu0 %v729
    %v731 = vpop.xlane.xlu0 %730
    %v732 = vsel %vm326, %v520, -inf
    %733 = vmax.xlane.f32.xlu0 %v732
    %v734 = vpop.xlane.xlu0 %733
    %v735 = vsel %vm326, %v568, -inf
    %736 = vmax.xlane.f32.xlu0 %v735
    %v737 = vpop.xlane.xlu0 %736
    %v738 = vsel %vm326, %v618, -inf
    %739 = vmax.xlane.f32.xlu0 %v738
    %v740 = vpop.xlane.xlu0 %739
    %v741 = vsel %vm326, %v668, -inf
    %742 = vmax.xlane.f32.xlu0 %v741
    %v743 = vpop.xlane.xlu0 %742
    %v744 = vsel %vm326, %v718, -inf
    %745 = vmax.xlane.f32.xlu0 %v744
    %v746 = vpop.xlane.xlu0 %745
    %v747 = vsub.f32 %v368, %v725
    %v748 = vsub.f32 %v420, %v728
    %v749 = vsub.f32 %v470, %v731
    %v750 = vsub.f32 %v520, %v734
    %v751 = vsub.f32 %v568, %v737
    %v752 = vsub.f32 %v618, %v740
    %v753 = vsub.f32 %v668, %v743
    %v754 = vsub.f32 %v718, %v746
    %v755 = vmul.f32 %v747, 1.442695
    %v756 = vpow.pop %v755
    %v757 = vmul.f32 %v748, 1.442695
    %v758 = vpow.pop %v757
    %v759 = vmul.f32 %v749, 1.442695
    %v760 = vpow.pop %v759
    %v761 = vmul.f32 %v750, 1.442695
    %v762 = vpow.pop %v761
    %v763 = vmul.f32 %v751, 1.442695
    %v764 = vpow.pop %v763
    %v765 = vmul.f32 %v752, 1.442695
    %v766 = vpow.pop %v765
    %v767 = vmul.f32 %v753, 1.442695
    %v768 = vpow.pop %v767
    %v769 = vmul.f32 %v754, 1.442695
    %v770 = vpow.pop %v769
    %v771 = vsel %vm326, %v756, 0.0
    %772 = vadd.xlane.f32.xlu0 %v771
    %v773 = vpop.xlane.xlu0 %772
    %v774 = vsel %vm326, %v758, 0.0
    %775 = vadd.xlane.f32.xlu0 %v774
    %v776 = vpop.xlane.xlu0 %775
    %v777 = vsel %vm326, %v760, 0.0
    %778 = vadd.xlane.f32.xlu0 %v777
    %v779 = vpop.xlane.xlu0 %778
    %v780 = vsel %vm326, %v762, 0.0
    %781 = vadd.xlane.f32.xlu0 %v780
    %v782 = vpop.xlane.xlu0 %781
    %v783 = vsel %vm326, %v764, 0.0
    %784 = vadd.xlane.f32.xlu0 %v783
    %v785 = vpop.xlane.xlu0 %784
    %v786 = vsel %vm326, %v766, 0.0
    %787 = vadd.xlane.f32.xlu0 %v786
    %v788 = vpop.xlane.xlu0 %787
    %v789 = vsel %vm326, %v768, 0.0
    %790 = vadd.xlane.f32.xlu0 %v789
    %v791 = vpop.xlane.xlu0 %790
    %v792 = vsel %vm326, %v770, 0.0
    %793 = vadd.xlane.f32.xlu0 %v792
    %v794 = vpop.xlane.xlu0 %793
    %v795 = vrcp.pop %v773
    %v796 = vrcp.pop %v776
    %v797 = vrcp.pop %v779
    %v798 = vrcp.pop %v782
    %v799 = vrcp.pop %v785
    %v800 = vrcp.pop %v788
    %v801 = vrcp.pop %v791
    %v802 = vrcp.pop %v794
    %v803 = vmul.f32 %v756, %v795
    %v804 = vmul.f32 %v758, %v796
    %v805 = vmul.f32 %v760, %v797
    %v806 = vmul.f32 %v762, %v798
    %v807 = vmul.f32 %v764, %v799
    %v808 = vmul.f32 %v766, %v800
    %v809 = vmul.f32 %v768, %v801
    %v810 = vmul.f32 %v770, %v802
    %v811 = vpack.c.bf16 %v804, %v803
    %v812 = vpack.c.bf16 %v806, %v805
    %v813 = vpack.c.bf16 %v808, %v807
    %v814 = vpack.c.bf16 %v810, %v809
    %v816 = vsel %vm326, %v811, 0
    %vm818 = vcmask 1043456
    %v820 = vsel %vm818, %v325, 0
    %822 = vmatprep.subr.bf16.mxu0 0
    %823 = vmatpush1.bf16.msra.mxu0 %v820
    %824 = vmatprep.subr.bf16.mxu0 0
    %825 = vmatpush1.bf16.msra.mxu0 0
    %826 = vmatprep.subr.bf16.mxu0 0
    %827 = vmatpush1.bf16.msra.mxu0 0
    %828 = vmatprep.subr.bf16.mxu0 0
    %829 = vmatpush1.bf16.msra.mxu0 0
    %830 = vmatprep.subr.bf16.mxu0 0
    %831 = vmatpush1.bf16.msra.mxu0 0
    %832 = vmatprep.subr.bf16.mxu0 0
    %833 = vmatpush1.bf16.msra.mxu0 0
    %834 = vmatprep.subr.bf16.mxu0 0
    %835 = vmatpush1.bf16.msra.mxu0 0
    %836 = vmatprep.subr.bf16.mxu0 0
    %837 = vmatpush1.bf16.msra.mxu0 0
    %838 = vmatprep.subr.bf16.mxu0 0
    %839 = vmatpush1.bf16.msra.mxu0 0
    %840 = vmatprep.subr.bf16.mxu0 0
    %841 = vmatpush1.bf16.msra.mxu0 0
    %842 = vmatprep.subr.bf16.mxu0 0
    %843 = vmatpush1.bf16.msra.mxu0 0
    %844 = vmatprep.subr.bf16.mxu0 0
    %845 = vmatpush1.bf16.msra.mxu0 0
    %846 = vmatprep.subr.bf16.mxu0 0
    %847 = vmatpush1.bf16.msra.mxu0 0
    %848 = vmatprep.subr.bf16.mxu0 0
    %849 = vmatpush1.bf16.msra.mxu0 0
    %850 = vmatprep.subr.bf16.mxu0 0
    %851 = vmatpush1.bf16.msra.mxu0 0
    %852 = vmatprep.subr.bf16.mxu0 0
    %853 = vmatpush1.bf16.msra.mxu0 0
    %854 = vmatprep.mubr.bf16.mxu0 0
    %855 = vmatmul.mubr.bf16.gmra.mrb[0].mxu0 %v816
    %v856 = vpop.f32.mrb[0].mxu0
    %v857 = vadd.f32 0.0, %v856
    %v858 = vpop.f32.mrb[0].mxu0
    %v859 = vpop.f32.mrb[0].mxu0
    %v860 = vpop.f32.mrb[0].mxu0
    %861 = vdwg.mxu0
    %v863 = vrot.slane %v811, 4
    %865 = vrot.lane.b32.xlu0 %v325, 120
    %v866 = vpop.permute.xlu0 %865
    %v868 = vsel %vm326, %v863, 0
    %v871 = vsel %vm818, %v866, 0
    %873 = vmatprep.subr.bf16.mxu0 0
    %874 = vmatpush1.bf16.msra.mxu0 %v871
    %875 = vmatprep.subr.bf16.mxu0 0
    %876 = vmatpush1.bf16.msra.mxu0 0
    %877 = vmatprep.subr.bf16.mxu0 0
    %878 = vmatpush1.bf16.msra.mxu0 0
    %879 = vmatprep.subr.bf16.mxu0 0
    %880 = vmatpush1.bf16.msra.mxu0 0
    %881 = vmatprep.subr.bf16.mxu0 0
    %882 = vmatpush1.bf16.msra.mxu0 0
    %883 = vmatprep.subr.bf16.mxu0 0
    %884 = vmatpush1.bf16.msra.mxu0 0
    %885 = vmatprep.subr.bf16.mxu0 0
    %886 = vmatpush1.bf16.msra.mxu0 0
    %887 = vmatprep.subr.bf16.mxu0 0
    %888 = vmatpush1.bf16.msra.mxu0 0
    %889 = vmatprep.subr.bf16.mxu0 0
    %890 = vmatpush1.bf16.msra.mxu0 0
    %891 = vmatprep.subr.bf16.mxu0 0
    %892 = vmatpush1.bf16.msra.mxu0 0
    %893 = vmatprep.subr.bf16.mxu0 0
    %894 = vmatpush1.bf16.msra.mxu0 0
    %895 = vmatprep.subr.bf16.mxu0 0
    %896 = vmatpush1.bf16.msra.mxu0 0
    %897 = vmatprep.subr.bf16.mxu0 0
    %898 = vmatpush1.bf16.msra.mxu0 0
    %899 = vmatprep.subr.bf16.mxu0 0
    %900 = vmatpush1.bf16.msra.mxu0 0
    %901 = vmatprep.subr.bf16.mxu0 0
    %902 = vmatpush1.bf16.msra.mxu0 0
    %903 = vmatprep.subr.bf16.mxu0 0
    %904 = vmatpush1.bf16.msra.mxu0 0
    %905 = vmatprep.mubr.bf16.mxu0 0
    %906 = vmatmul.mubr.bf16.gmra.mrb[0].mxu0 %v868
    %v907 = vpop.f32.mrb[0].mxu0
    %v908 = vadd.f32 0.0, %v907
    %v909 = vpop.f32.mrb[0].mxu0
    %v910 = vpop.f32.mrb[0].mxu0
    %v911 = vpop.f32.mrb[0].mxu0
    %912 = vdwg.mxu0
    %913 = vrot.lane.b32.xlu0 %v325, 112
    %v914 = vpop.permute.xlu0 %913
    %v916 = vsel %vm326, %v812, 0
    %v919 = vsel %vm818, %v914, 0
    %921 = vmatprep.subr.bf16.mxu0 0
    %922 = vmatpush1.bf16.msra.mxu0 %v919
    %923 = vmatprep.subr.bf16.mxu0 0
    %924 = vmatpush1.bf16.msra.mxu0 0
    %925 = vmatprep.subr.bf16.mxu0 0
    %926 = vmatpush1.bf16.msra.mxu0 0
    %927 = vmatprep.subr.bf16.mxu0 0
    %928 = vmatpush1.bf16.msra.mxu0 0
    %929 = vmatprep.subr.bf16.mxu0 0
    %930 = vmatpush1.bf16.msra.mxu0 0
    %931 = vmatprep.subr.bf16.mxu0 0
    %932 = vmatpush1.bf16.msra.mxu0 0
    %933 = vmatprep.subr.bf16.mxu0 0
    %934 = vmatpush1.bf16.msra.mxu0 0
    %935 = vmatprep.subr.bf16.mxu0 0
    %936 = vmatpush1.bf16.msra.mxu0 0
    %937 = vmatprep.subr.bf16.mxu0 0
    %938 = vmatpush1.bf16.msra.mxu0 0
    %939 = vmatprep.subr.bf16.mxu0 0
    %940 = vmatpush1.bf16.msra.mxu0 0
    %941 = vmatprep.subr.bf16.mxu0 0
    %942 = vmatpush1.bf16.msra.mxu0 0
    %943 = vmatprep.subr.bf16.mxu0 0
    %944 = vmatpush1.bf16.msra.mxu0 0
    %945 = vmatprep.subr.bf16.mxu0 0
    %946 = vmatpush1.bf16.msra.mxu0 0
    %947 = vmatprep.subr.bf16.mxu0 0
    %948 = vmatpush1.bf16.msra.mxu0 0
    %949 = vmatprep.subr.bf16.mxu0 0
    %950 = vmatpush1.bf16.msra.mxu0 0
    %951 = vmatprep.subr.bf16.mxu0 0
    %952 = vmatpush1.bf16.msra.mxu0 0
    %953 = vmatprep.mubr.bf16.mxu0 0
    %954 = vmatmul.mubr.bf16.gmra.mrb[0].mxu0 %v916
    %v955 = vpop.f32.mrb[0].mxu0
    %v956 = vadd.f32 0.0, %v955
    %v957 = vpop.f32.mrb[0].mxu0
    %v958 = vpop.f32.mrb[0].mxu0
    %v959 = vpop.f32.mrb[0].mxu0
    %960 = vdwg.mxu0
    %v962 = vrot.slane %v812, 4
    %963 = vrot.lane.b32.xlu0 %v325, 104
    %v964 = vpop.permute.xlu0 %963
    %v966 = vsel %vm326, %v962, 0
    %v969 = vsel %vm818, %v964, 0
    %971 = vmatprep.subr.bf16.mxu0 0
    %972 = vmatpush1.bf16.msra.mxu0 %v969
    %973 = vmatprep.subr.bf16.mxu0 0
    %974 = vmatpush1.bf16.msra.mxu0 0
    %975 = vmatprep.subr.bf16.mxu0 0
    %976 = vmatpush1.bf16.msra.mxu0 0
    %977 = vmatprep.subr.bf16.mxu0 0
    %978 = vmatpush1.bf16.msra.mxu0 0
    %979 = vmatprep.subr.bf16.mxu0 0
    %980 = vmatpush1.bf16.msra.mxu0 0
    %981 = vmatprep.subr.bf16.mxu0 0
    %982 = vmatpush1.bf16.msra.mxu0 0
    %983 = vmatprep.subr.bf16.mxu0 0
    %984 = vmatpush1.bf16.msra.mxu0 0
    %985 = vmatprep.subr.bf16.mxu0 0
    %986 = vmatpush1.bf16.msra.mxu0 0
    %987 = vmatprep.subr.bf16.mxu0 0
    %988 = vmatpush1.bf16.msra.mxu0 0
    %989 = vmatprep.subr.bf16.mxu0 0
    %990 = vmatpush1.bf16.msra.mxu0 0
    %991 = vmatprep.subr.bf16.mxu0 0
    %992 = vmatpush1.bf16.msra.mxu0 0
    %993 = vmatprep.subr.bf16.mxu0 0
    %994 = vmatpush1.bf16.msra.mxu0 0
    %995 = vmatprep.subr.bf16.mxu0 0
    %996 = vmatpush1.bf16.msra.mxu0 0
    %997 = vmatprep.subr.bf16.mxu0 0
    %998 = vmatpush1.bf16.msra.mxu0 0
    %999 = vmatprep.subr.bf16.mxu0 0
    %1000 = vmatpush1.bf16.msra.mxu0 0
    %1001 = vmatprep.subr.bf16.mxu0 0
    %1002 = vmatpush1.bf16.msra.mxu0 0
    %1003 = vmatprep.mubr.bf16.mxu0 0
    %1004 = vmatmul.mubr.bf16.gmra.mrb[0].mxu0 %v966
    %v1005 = vpop.f32.mrb[0].mxu0
    %v1006 = vadd.f32 0.0, %v1005
    %v1007 = vpop.f32.mrb[0].mxu0
    %v1008 = vpop.f32.mrb[0].mxu0
    %v1009 = vpop.f32.mrb[0].mxu0
    %1010 = vdwg.mxu0
    %1012 = vrot.lane.b32.xlu0 %v908, 8
    %v1013 = vpop.permute.xlu0 %1012
    %1016 = vrot.lane.b32.xlu0 %v956, 16
    %v1017 = vpop.permute.xlu0 %1016
    %1020 = vrot.lane.b32.xlu0 %v1006, 24
    %v1021 = vpop.permute.xlu0 %1020
    %v1023 = vsel %vm326, %v857, %v1013
    %vm1024 = vcmask 130048
    %v1025 = vsel %vm1024, %v1023, %v1017
    %vm1026 = vcmask 195584
    %v1027 = vsel %vm1026, %v1025, %v1021
    %v1028 = vrot.slane %v325, 4
    %v1030 = vsel %vm326, %v813, 0
    %v1033 = vsel %vm818, %v1028, 0
    %1035 = vmatprep.subr.bf16.mxu0 0
    %1036 = vmatpush1.bf16.msra.mxu0 %v1033
    %1037 = vmatprep.subr.bf16.mxu0 0
    %1038 = vmatpush1.bf16.msra.mxu0 0
    %1039 = vmatprep.subr.bf16.mxu0 0
    %1040 = vmatpush1.bf16.msra.mxu0 0
    %1041 = vmatprep.subr.bf16.mxu0 0
    %1042 = vmatpush1.bf16.msra.mxu0 0
    %1043 = vmatprep.subr.bf16.mxu0 0
    %1044 = vmatpush1.bf16.msra.mxu0 0
    %1045 = vmatprep.subr.bf16.mxu0 0
    %1046 = vmatpush1.bf16.msra.mxu0 0
    %1047 = vmatprep.subr.bf16.mxu0 0
    %1048 = vmatpush1.bf16.msra.mxu0 0
    %1049 = vmatprep.subr.bf16.mxu0 0
    %1050 = vmatpush1.bf16.msra.mxu0 0
    %1051 = vmatprep.subr.bf16.mxu0 0
    %1052 = vmatpush1.bf16.msra.mxu0 0
    %1053 = vmatprep.subr.bf16.mxu0 0
    %1054 = vmatpush1.bf16.msra.mxu0 0
    %1055 = vmatprep.subr.bf16.mxu0 0
    %1056 = vmatpush1.bf16.msra.mxu0 0
    %1057 = vmatprep.subr.bf16.mxu0 0
    %1058 = vmatpush1.bf16.msra.mxu0 0
    %1059 = vmatprep.subr.bf16.mxu0 0
    %1060 = vmatpush1.bf16.msra.mxu0 0
    %1061 = vmatprep.subr.bf16.mxu0 0
    %1062 = vmatpush1.bf16.msra.mxu0 0
    %1063 = vmatprep.subr.bf16.mxu0 0
    %1064 = vmatpush1.bf16.msra.mxu0 0
    %1065 = vmatprep.subr.bf16.mxu0 0
    %1066 = vmatpush1.bf16.msra.mxu0 0
    %1067 = vmatprep.mubr.bf16.mxu0 0
    %1068 = vmatmul.mubr.bf16.gmra.mrb[0].mxu0 %v1030
    %v1069 = vpop.f32.mrb[0].mxu0
    %v1070 = vadd.f32 0.0, %v1069
    %v1071 = vpop.f32.mrb[0].mxu0
    %v1072 = vpop.f32.mrb[0].mxu0
    %v1073 = vpop.f32.mrb[0].mxu0
    %1074 = vdwg.mxu0
    %v1076 = vrot.slane %v813, 4
    %1077 = vrot.lane.b32.xlu0 %v1028, 120
    %v1078 = vpop.permute.xlu0 %1077
    %v1080 = vsel %vm326, %v1076, 0
    %v1083 = vsel %vm818, %v1078, 0
    %1085 = vmatprep.subr.bf16.mxu0 0
    %1086 = vmatpush1.bf16.msra.mxu0 %v1083
    %1087 = vmatprep.subr.bf16.mxu0 0
    %1088 = vmatpush1.bf16.msra.mxu0 0
    %1089 = vmatprep.subr.bf16.mxu0 0
    %1090 = vmatpush1.bf16.msra.mxu0 0
    %1091 = vmatprep.subr.bf16.mxu0 0
    %1092 = vmatpush1.bf16.msra.mxu0 0
    %1093 = vmatprep.subr.bf16.mxu0 0
    %1094 = vmatpush1.bf16.msra.mxu0 0
    %1095 = vmatprep.subr.bf16.mxu0 0
    %1096 = vmatpush1.bf16.msra.mxu0 0
    %1097 = vmatprep.subr.bf16.mxu0 0
    %1098 = vmatpush1.bf16.msra.mxu0 0
    %1099 = vmatprep.subr.bf16.mxu0 0
    %1100 = vmatpush1.bf16.msra.mxu0 0
    %1101 = vmatprep.subr.bf16.mxu0 0
    %1102 = vmatpush1.bf16.msra.mxu0 0
    %1103 = vmatprep.subr.bf16.mxu0 0
    %1104 = vmatpush1.bf16.msra.mxu0 0
    %1105 = vmatprep.subr.bf16.mxu0 0
    %1106 = vmatpush1.bf16.msra.mxu0 0
    %1107 = vmatprep.subr.bf16.mxu0 0
    %1108 = vmatpush1.bf16.msra.mxu0 0
    %1109 = vmatprep.subr.bf16.mxu0 0
    %1110 = vmatpush1.bf16.msra.mxu0 0
    %1111 = vmatprep.subr.bf16.mxu0 0
    %1112 = vmatpush1.bf16.msra.mxu0 0
    %1113 = vmatprep.subr.bf16.mxu0 0
    %1114 = vmatpush1.bf16.msra.mxu0 0
    %1115 = vmatprep.subr.bf16.mxu0 0
    %1116 = vmatpush1.bf16.msra.mxu0 0
    %1117 = vmatprep.mubr.bf16.mxu0 0
    %1118 = vmatmul.mubr.bf16.gmra.mrb[0].mxu0 %v1080
    %v1119 = vpop.f32.mrb[0].mxu0
    %v1120 = vadd.f32 0.0, %v1119
    %v1121 = vpop.f32.mrb[0].mxu0
    %v1122 = vpop.f32.mrb[0].mxu0
    %v1123 = vpop.f32.mrb[0].mxu0
    %1124 = vdwg.mxu0
    %1125 = vrot.lane.b32.xlu0 %v1028, 112
    %v1126 = vpop.permute.xlu0 %1125
    %v1128 = vsel %vm326, %v814, 0
    %v1131 = vsel %vm818, %v1126, 0
    %1133 = vmatprep.subr.bf16.mxu0 0
    %1134 = vmatpush1.bf16.msra.mxu0 %v1131
    %1135 = vmatprep.subr.bf16.mxu0 0
    %1136 = vmatpush1.bf16.msra.mxu0 0
    %1137 = vmatprep.subr.bf16.mxu0 0
    %1138 = vmatpush1.bf16.msra.mxu0 0
    %1139 = vmatprep.subr.bf16.mxu0 0
    %1140 = vmatpush1.bf16.msra.mxu0 0
    %1141 = vmatprep.subr.bf16.mxu0 0
    %1142 = vmatpush1.bf16.msra.mxu0 0
    %1143 = vmatprep.subr.bf16.mxu0 0
    %1144 = vmatpush1.bf16.msra.mxu0 0
    %1145 = vmatprep.subr.bf16.mxu0 0
    %1146 = vmatpush1.bf16.msra.mxu0 0
    %1147 = vmatprep.subr.bf16.mxu0 0
    %1148 = vmatpush1.bf16.msra.mxu0 0
    %1149 = vmatprep.subr.bf16.mxu0 0
    %1150 = vmatpush1.bf16.msra.mxu0 0
    %1151 = vmatprep.subr.bf16.mxu0 0
    %1152 = vmatpush1.bf16.msra.mxu0 0
    %1153 = vmatprep.subr.bf16.mxu0 0
    %1154 = vmatpush1.bf16.msra.mxu0 0
    %1155 = vmatprep.subr.bf16.mxu0 0
    %1156 = vmatpush1.bf16.msra.mxu0 0
    %1157 = vmatprep.subr.bf16.mxu0 0
    %1158 = vmatpush1.bf16.msra.mxu0 0
    %1159 = vmatprep.subr.bf16.mxu0 0
    %1160 = vmatpush1.bf16.msra.mxu0 0
    %1161 = vmatprep.subr.bf16.mxu0 0
    %1162 = vmatpush1.bf16.msra.mxu0 0
    %1163 = vmatprep.subr.bf16.mxu0 0
    %1164 = vmatpush1.bf16.msra.mxu0 0
    %1165 = vmatprep.mubr.bf16.mxu0 0
    %1166 = vmatmul.mubr.bf16.gmra.mrb[0].mxu0 %v1128
    %v1167 = vpop.f32.mrb[0].mxu0
    %v1168 = vadd.f32 0.0, %v1167
    %v1169 = vpop.f32.mrb[0].mxu0
    %v1170 = vpop.f32.mrb[0].mxu0
    %v1171 = vpop.f32.mrb[0].mxu0
    %1172 = vdwg.mxu0
    %v1174 = vrot.slane %v814, 4
    %1175 = vrot.lane.b32.xlu0 %v1028, 104
    %v1176 = vpop.permute.xlu0 %1175
    %v1178 = vsel %vm326, %v1174, 0
    %v1181 = vsel %vm818, %v1176, 0
    %1183 = vmatprep.subr.bf16.mxu0 0
    %1184 = vmatpush1.bf16.msra.mxu0 %v1181
    %1185 = vmatprep.subr.bf16.mxu0 0
    %1186 = vmatpush1.bf16.msra.mxu0 0
    %1187 = vmatprep.subr.bf16.mxu0 0
    %1188 = vmatpush1.bf16.msra.mxu0 0
    %1189 = vmatprep.subr.bf16.mxu0 0
    %1190 = vmatpush1.bf16.msra.mxu0 0
    %1191 = vmatprep.subr.bf16.mxu0 0
    %1192 = vmatpush1.bf16.msra.mxu0 0
    %1193 = vmatprep.subr.bf16.mxu0 0
    %1194 = vmatpush1.bf16.msra.mxu0 0
    %1195 = vmatprep.subr.bf16.mxu0 0
    %1196 = vmatpush1.bf16.msra.mxu0 0
    %1197 = vmatprep.subr.bf16.mxu0 0
    %1198 = vmatpush1.bf16.msra.mxu0 0
    %1199 = vmatprep.subr.bf16.mxu0 0
    %1200 = vmatpush1.bf16.msra.mxu0 0
    %1201 = vmatprep.subr.bf16.mxu0 0
    %1202 = vmatpush1.bf16.msra.mxu0 0
    %1203 = vmatprep.subr.bf16.mxu0 0
    %1204 = vmatpush1.bf16.msra.mxu0 0
    %1205 = vmatprep.subr.bf16.mxu0 0
    %1206 = vmatpush1.bf16.msra.mxu0 0
    %1207 = vmatprep.subr.bf16.mxu0 0
    %1208 = vmatpush1.bf16.msra.mxu0 0
    %1209 = vmatprep.subr.bf16.mxu0 0
    %1210 = vmatpush1.bf16.msra.mxu0 0
    %1211 = vmatprep.subr.bf16.mxu0 0
    %1212 = vmatpush1.bf16.msra.mxu0 0
    %1213 = vmatprep.subr.bf16.mxu0 0
    %1214 = vmatpush1.bf16.msra.mxu0 0
    %1215 = vmatprep.mubr.bf16.mxu0 0
    %1216 = vmatmul.mubr.bf16.gmra.mrb[0].mxu0 %v1178
    %v1217 = vpop.f32.mrb[0].mxu0
    %v1218 = vadd.f32 0.0, %v1217
    %v1219 = vpop.f32.mrb[0].mxu0
    %v1220 = vpop.f32.mrb[0].mxu0
    %v1221 = vpop.f32.mrb[0].mxu0
    %1222 = vdwg.mxu0
    %1224 = vrot.lane.b32.xlu0 %v1120, 8
    %v1225 = vpop.permute.xlu0 %1224
    %1228 = vrot.lane.b32.xlu0 %v1168, 16
    %v1229 = vpop.permute.xlu0 %1228
    %1232 = vrot.lane.b32.xlu0 %v1218, 24
    %v1233 = vpop.permute.xlu0 %1232
    %v1235 = vsel %vm326, %v1070, %v1225
    %v1236 = vsel %vm1024, %v1235, %v1229
    %v1237 = vsel %vm1026, %v1236, %v1233
    %v1238 = vpack.c.bf16 %v1237, %v1027
    %v1239 = vld [vmem:[#allocation11] sm:$0xf]
    %v1240 = vld [vmem:[#allocation11 + $0x4] sm:$0xf]
    %v1241 = vld [vmem:[#allocation11 + $0x8] sm:$0xf]
    %v1242 = vld [vmem:[#allocation11 + $0xc] sm:$0xf]
    %v1243 = vld [vmem:[%s9] sm:$0x1]
    %v1245 = vlaneseq
    %v1246 = vshrl.u32 %v1245, 7
    %v1247 = vsub.s32 0, %v1246
    %v1248 = vrot.slane %v1243, %v1247
    %v1254 = vunpack.c.l.b16 %v1239
    %v1255 = vunpack.c.l.b16 %v1240
    %v1256 = vunpack.c.l.b16 %v1241
    %v1257 = vunpack.c.l.b16 %v1242
    %v1258 = vpack.c.b16 %v1255, %v1254
    %v1259 = vpack.c.b16 %v1257, %v1256
    %v1263 = vsel %vm145, %v1238, 0
    %1265 = vmatprep.subr.bf16.mxu0 0
    %1266 = vmatpush1.bf16.msra.mxu0 %v1258
    %1267 = vmatprep.subr.bf16.mxu0 0
    %1268 = vmatpush1.bf16.msra.mxu0 %v1259
    %1269 = vmatprep.subr.bf16.mxu0 0
    %1270 = vmatpush1.bf16.msra.mxu0 0
    %1271 = vmatprep.subr.bf16.mxu0 0
    %1272 = vmatpush1.bf16.msra.mxu0 0
    %1273 = vmatprep.subr.bf16.mxu0 0
    %1274 = vmatpush1.bf16.msra.mxu0 0
    %1275 = vmatprep.subr.bf16.mxu0 0
    %1276 = vmatpush1.bf16.msra.mxu0 0
    %1277 = vmatprep.subr.bf16.mxu0 0
    %1278 = vmatpush1.bf16.msra.mxu0 0
    %1279 = vmatprep.subr.bf16.mxu0 0
    %1280 = vmatpush1.bf16.msra.mxu0 0
    %1281 = vmatprep.subr.bf16.mxu0 0
    %1282 = vmatpush1.bf16.msra.mxu0 0
    %1283 = vmatprep.subr.bf16.mxu0 0
    %1284 = vmatpush1.bf16.msra.mxu0 0
    %1285 = vmatprep.subr.bf16.mxu0 0
    %1286 = vmatpush1.bf16.msra.mxu0 0
    %1287 = vmatprep.subr.bf16.mxu0 0
    %1288 = vmatpush1.bf16.msra.mxu0 0
    %1289 = vmatprep.subr.bf16.mxu0 0
    %1290 = vmatpush1.bf16.msra.mxu0 0
    %1291 = vmatprep.subr.bf16.mxu0 0
    %1292 = vmatpush1.bf16.msra.mxu0 0
    %1293 = vmatprep.subr.bf16.mxu0 0
    %1294 = vmatpush1.bf16.msra.mxu0 0
    %1295 = vmatprep.subr.bf16.mxu0 0
    %1296 = vmatpush1.bf16.msra.mxu0 0
    %1297 = vmatprep.mubr.bf16.mxu0 0
    %1298 = vmatmul.mubr.bf16.gmra.mrb[0].mxu0 %v1263
    %v1299 = vpop.f32.mrb[0].mxu0
    %v1300 = vadd.f32 %v1248, %v1299
    %v1301 = vpop.f32.mrb[0].mxu0
    %v1302 = vpop.f32.mrb[0].mxu0
    %v1303 = vadd.f32 %v1248, %v1302
    %v1304 = vpop.f32.mrb[0].mxu0
    %1305 = vdwg.mxu0
    %1306 = vst.msk [vmem:[#allocation13] sm:$0xff] %vm145, %v1300
    %1307 = vst.msk [vmem:[#allocation13 + $0x8] sm:$0xff] %vm145, %v1303
    // Predicated region
    $region66: #{tpu_custom_call.1} parent=1 // pred_check
      _
    $region67: #{tpu_custom_call.1} parent=1 // pred_check_branch
      %1309 = sbr.rel (0) target = $region69
    $region68: #{tpu_custom_call.1} parent=1 // pred_region
      %s1311 = ssub.s32 256, 256
      %1312 = vsyncadd [#allocation4], %s1311
      %s1313 = sshll.u32 [#allocation13], 4
      %s1314 = int_to_ptr.vmem [resolvable:$true] %s1313
      %1319 = dma.vmem_to_hbm [thread:$0]  %s1314, 256, %s10, [#allocation4], 128, 128, 8
    $region69: #{tpu_custom_call.1} parent=1 // pred_fallthru
      _
    // Predicated region
    $region70: #{tpu_custom_call.1} parent=1 // pred_check
      _
    $region71: #{tpu_custom_call.1} parent=1 // pred_check_branch
      %1321 = sbr.rel (0) target = $region73
    $region72: #{tpu_custom_call.1} parent=1 // pred_region
      %1322 = dma.done [#allocation4], 256
    $region73: #{tpu_custom_call.1} parent=1 // pred_fallthru
      _
    %1323 = vsyncpa [#allocation3], 1
    %1324 = vsyncpa [#allocation6], 1
    %1325 = vsyncpa [#allocation9], 1
    %1326 = vsyncpa [#allocation12], 1
    %1327 = vsyncpa [#allocation4], 1

</llo_original>
